<compile_context>
chip_gen: v6e
topology: v6e:2x2x1
jax: 0.10.0
libtpu: 0.0.40
codegen_flags: <defaults>
</compile_context>

<pallas_src>
import functools

import jax
import jax.numpy as jnp
from jax import lax
from jax.experimental import pallas as pl
from jax.experimental.pallas import tpu as pltpu


def _round_up(x, m):
    return ((x + m - 1) // m) * m


def _layernorm_rows_kernel(x_ref, gamma_ref, beta_ref, o_ref, *, eps, fn):
    """Unpacked path: one logical row per physical row (D >= 128 or 128 % D != 0)."""
    x = x_ref[...].astype(jnp.float32)                        # (br, D)
    inv_d = 1.0 / x.shape[-1]
    mean = jnp.sum(x, axis=-1, keepdims=True) * inv_d         # (br, 1)
    meansq = jnp.sum(x * x, axis=-1, keepdims=True) * inv_d   # (br, 1)
    var = jnp.maximum(meansq - mean * mean, 0.0)              # biased, like torch
    inv_std = lax.rsqrt(var + eps)                            # EUP slot
    scale = inv_std * gamma_ref[...]                          # gamma folded in
    shift = beta_ref[...] - mean * scale
    o_ref[...] = fn(x * scale + shift).astype(o_ref.dtype)    # single FMA + fn


def _layernorm_packed_kernel(x_ref, seg_ref, segt_ref, gamma_ref, beta_ref,
                             o_ref, *, eps, d, fn):
    """Lane-dense path: k = 128 // d logical rows per 128-wide physical row."""
    hi = lax.Precision.HIGHEST            # keep the 0/1 matmuls f32-exact
    x = x_ref[...].astype(jnp.float32)    # (br, 128)
    seg = seg_ref[...]                    # (128, k) block-diagonal ones
    segt = segt_ref[...]                  # (k, 128) its transpose
    inv_d = 1.0 / d
    # Segmented sums on the (otherwise idle) MXU.
    s1 = jnp.dot(x, seg, precision=hi,
                 preferred_element_type=jnp.float32) * inv_d            # (br, k) mean
    s2 = jnp.dot(x * x, seg, precision=hi,
                 preferred_element_type=jnp.float32) * inv_d            # (br, k) E[x^2]
    var = jnp.maximum(s2 - s1 * s1, 0.0)
    inv_std = lax.rsqrt(var + eps)                                      # EUP slot
    # Broadcast per-segment stats back to full lane width via seg.T.
    mean_b = jnp.dot(s1, segt, precision=hi,
                     preferred_element_type=jnp.float32)                # (br, 128)
    inv_b = jnp.dot(inv_std, segt, precision=hi,
                    preferred_element_type=jnp.float32)                 # (br, 128)
    scale = inv_b * gamma_ref[...]
    y = (x - mean_b) * scale + beta_ref[...]
    o_ref[...] = fn(y).astype(o_ref.dtype)


def _vmem_capacity_bytes():
    try:
        return int(pltpu.get_tpu_info().vmem_capacity_bytes)
    except Exception:
        return 64 * 1024 * 1024  # conservative default: v7x per-TC VMEM


class LayerNormalize:
    """JAX/Pallas port of the PyTorch LayerNormalize(dim, fn) module."""

    _TARGET_GRID_STEPS = 4    # keep both v7x TCs fed + DMA/compute overlap
    _MIN_ROWS_PER_STEP = 256  # below this the ~0.35us/step overhead shows

    def __init__(self, dim, fn, *, eps=1e-5, gamma=None, beta=None,
                 block_rows=None):
        self.dim = dim
        self.fn = fn
        self.eps = float(eps)
        self.block_rows = block_rows  # None -> auto-size per call
        # nn.LayerNorm default init: weight=1, bias=0 (overridable for tests).
        self.gamma = jnp.ones((dim,), jnp.float32) if gamma is None else gamma
        self.beta = jnp.zeros((dim,), jnp.float32) if beta is None else beta
        # Generation-aware VMEM budgets.
        vmem_cap = _vmem_capacity_bytes()
        if vmem_cap >= 96 * 1024 * 1024:       # v5e / v6e: 128 MiB physical
            self._vmem_limit = 96 * 1024 * 1024
            self._work_budget = 48 * 1024 * 1024
        else:                                  # v7x: 64 MiB physical per TC
            self._vmem_limit = 40 * 1024 * 1024
            self._work_budget = 20 * 1024 * 1024

    def _pick_block_rows(self, n_rows, width, itemsize):
        # Minimum sublane packing per dtype (f32:8, bf16:16, int8/fp8:32).
        sublane_min = {4: 8, 2: 16, 1: 32}.get(itemsize, 8)
        if n_rows <= sublane_min:
            return n_rows  # full-extent block is always legal
        # Per-row VMEM footprint: double-buffered in+out plus ~10 full-width
        # f32 intermediates produced by the traced kernel body (incl. fn).
        per_row = width * (4 * itemsize + 10 * 4)
        br = max(self._work_budget // per_row, sublane_min)
        # Large arrays: cap so the grid keeps >= _TARGET_GRID_STEPS steps
        # (v7x megacore sharding + pipelining), but never shrink a step below
        # the point where fixed per-step overhead matters.
        split = _round_up(pl.cdiv(n_rows, self._TARGET_GRID_STEPS), sublane_min)
        if split >= self._MIN_ROWS_PER_STEP:
            br = min(br, split)
        br = min(br, _round_up(n_rows, sublane_min))
        return max(_round_up(br, sublane_min), sublane_min)

    def __call__(self, x):
        orig_shape = x.shape
        assert orig_shape[-1] == self.dim, "last axis must equal normalized dim"
        out2d = self._forward_2d(x.reshape(-1, self.dim))
        return out2d.reshape(orig_shape)

    def _forward_2d(self, x2d):
        D = self.dim
        N = x2d.shape[0]
        itemsize = jnp.dtype(x2d.dtype).itemsize
        gamma32 = self.gamma.astype(jnp.float32)
        beta32 = self.beta.astype(jnp.float32)
        params = pltpu.CompilerParams(
            dimension_semantics=("parallel",),  # rows are independent
            vmem_limit_bytes=self._vmem_limit,
        )

        pack = (D < 128) and (128 % D == 0) and N > 0
        if not pack:
            # Simple per-row layout (already lane-dense when D % 128 == 0).
            br = self.block_rows or self._pick_block_rows(N, D, itemsize)
            kernel = functools.partial(_layernorm_rows_kernel,
                                       eps=self.eps, fn=self.fn)
            return pl.pallas_call(
                kernel,
                out_shape=jax.ShapeDtypeStruct((N, D), x2d.dtype),
                grid_spec=pltpu.PrefetchScalarGridSpec(
                    num_scalar_prefetch=0,
                    grid=(pl.cdiv(N, br),),
                    in_specs=[
                        pl.BlockSpec((br, D), lambda i: (i, 0)),  # x tile
                        pl.BlockSpec((1, D), lambda i: (0, 0)),   # gamma (resident)
                        pl.BlockSpec((1, D), lambda i: (0, 0)),   # beta  (resident)
                    ],
                    out_specs=pl.BlockSpec((br, D), lambda i: (i, 0)),
                ),
                compiler_params=params,
            )(x2d, gamma32.reshape(1, D), beta32.reshape(1, D))

        # ---- lane-dense packed path: k logical rows per 128-wide row ----
        k = 128 // D
        W = k * D  # == 128
        pad = (-N) % k
        if pad:  # tiny (< k rows) pad so rows fold evenly; sliced off below
            x2d = jnp.pad(x2d, ((0, pad), (0, 0)))
        Np = (N + pad) // k
        xp = x2d.reshape(Np, W)

        # Block-diagonal ones: seg[j, s] = 1 iff j // D == s.
        seg = (jnp.arange(W)[:, None] // D ==
               jnp.arange(k)[None, :]).astype(jnp.float32)       # (W, k)
        segt = seg.T                                             # (k, W)
        gamma_p = jnp.tile(gamma32, (k,)).reshape(1, W)
        beta_p = jnp.tile(beta32, (k,)).reshape(1, W)

        br = self.block_rows or self._pick_block_rows(Np, W, itemsize)
        kernel = functools.partial(_layernorm_packed_kernel,
                                   eps=self.eps, d=D, fn=self.fn)
        outp = pl.pallas_call(
            kernel,
            out_shape=jax.ShapeDtypeStruct((Np, W), x2d.dtype),
            grid_spec=pltpu.PrefetchScalarGridSpec(
                num_scalar_prefetch=0,
                grid=(pl.cdiv(Np, br),),
                in_specs=[
                    pl.BlockSpec((br, W), lambda i: (i, 0)),  # x tile
                    pl.BlockSpec((W, k), lambda i: (0, 0)),   # seg   (resident)
                    pl.BlockSpec((k, W), lambda i: (0, 0)),   # seg.T (resident)
                    pl.BlockSpec((1, W), lambda i: (0, 0)),   # gamma (resident)
                    pl.BlockSpec((1, W), lambda i: (0, 0)),   # beta  (resident)
                ],
                out_specs=pl.BlockSpec((br, W), lambda i: (i, 0)),
            ),
            compiler_params=params,
        )(xp, seg, segt, gamma_p, beta_p)

        out2d = outp.reshape(-1, D)
        if pad:
            out2d = out2d[:N]
        return out2d


def _reference(x, gamma, beta, eps, fn):
    x32 = x.astype(jnp.float32)
    mean = jnp.mean(x32, axis=-1, keepdims=True)
    var = jnp.mean((x32 - mean) ** 2, axis=-1, keepdims=True)
    y = (x32 - mean) * lax.rsqrt(var + eps) * gamma + beta
    return fn(y).astype(x.dtype)


if __name__ == "__main__":
    key = jax.random.PRNGKey(0)
    k_x, k_g, k_b, k_x2 = jax.random.split(key, 4)

    # `fn` in the original module is an arbitrary sub-module; use tanh-GELU so
    # the transcendental lands on the EUP slot (keeps the kernel HBM-bound).
    fn = functools.partial(jax.nn.gelu, approximate=True)

    # --- packed (lane-dense) path: D = 32 < 128 ---
    batch, seq, dim = 2, 8, 32
    x = jax.random.normal(k_x, (batch, seq, dim), dtype=jnp.float32)
    gamma = jax.random.normal(k_g, (dim,), dtype=jnp.float32) * 0.1 + 1.0
    beta = jax.random.normal(k_b, (dim,), dtype=jnp.float32) * 0.1
    module = LayerNormalize(dim, fn, gamma=gamma, beta=beta)
    out = jax.block_until_ready(module(x))
    ref = _reference(x, gamma, beta, 1e-5, fn)
    assert out.shape == x.shape
    assert jnp.allclose(out, ref, atol=3e-5, rtol=3e-5), "packed-path mismatch"

    # --- unpacked path: D = 128 (default LayerNorm affine params) ---
    dim2 = 128
    x2 = jax.random.normal(k_x2, (batch, seq, dim2), dtype=jnp.float32)
    module2 = LayerNormalize(dim2, fn)
    out2 = jax.block_until_ready(module2(x2))
    ref2 = _reference(x2, jnp.ones((dim2,), jnp.float32),
                      jnp.zeros((dim2,), jnp.float32), 1e-5, fn)
    assert out2.shape == x2.shape
    assert jnp.allclose(out2, ref2, atol=3e-5, rtol=3e-5), "rows-path mismatch"

    print("KERNEL_OK")
</pallas_src>

<mosaic_0001>
module attributes {stable_mosaic.version = 11 : i64} {
  func.func @_layernorm_packed_kernel(%arg0: i32, %arg1: memref<4x128xf32, #tpu.memory_space<vmem>>, %arg2: memref<128x4xf32, #tpu.memory_space<vmem>>, %arg3: memref<4x128xf32, #tpu.memory_space<vmem>>, %arg4: memref<1x128xf32, #tpu.memory_space<vmem>>, %arg5: memref<1x128xf32, #tpu.memory_space<vmem>>, %arg6: memref<4x128xf32, #tpu.memory_space<vmem>>) attributes {dimension_semantics = [#tpu.dimension_semantics<parallel>], iteration_bounds = array<i64: 1>, scalar_prefetch = 0 : i64, scratch_operands = 0 : i64, tpu.core_type = #tpu.core_type<tc>, window_params = [{transform_indices = @transform_0, window_bounds = array<i64: 4, 128>}, {pipeline_mode = #tpu.pipeline_mode<synchronous>, transform_indices = @transform_1, window_bounds = array<i64: 128, 4>}, {pipeline_mode = #tpu.pipeline_mode<synchronous>, transform_indices = @transform_2, window_bounds = array<i64: 4, 128>}, {pipeline_mode = #tpu.pipeline_mode<synchronous>, transform_indices = @transform_3, window_bounds = array<i64: 1, 128>}, {pipeline_mode = #tpu.pipeline_mode<synchronous>, transform_indices = @transform_4, window_bounds = array<i64: 1, 128>}, {transform_indices = @transform_5, window_bounds = array<i64: 4, 128>}]} {
    %c0 = arith.constant 0 : index
    %c0_0 = arith.constant 0 : index
    %0 = vector.load %arg1[%c0, %c0_0] : memref<4x128xf32, #tpu.memory_space<vmem>>, vector<4x128xf32>
    %c0_1 = arith.constant 0 : index
    %c0_2 = arith.constant 0 : index
    %1 = vector.load %arg2[%c0_1, %c0_2] : memref<128x4xf32, #tpu.memory_space<vmem>>, vector<128x4xf32>
    %c0_3 = arith.constant 0 : index
    %c0_4 = arith.constant 0 : index
    %2 = vector.load %arg3[%c0_3, %c0_4] : memref<4x128xf32, #tpu.memory_space<vmem>>, vector<4x128xf32>
    %cst = arith.constant dense<0.000000e+00> : vector<4x4xf32>
    %3 = tpu.matmul %0, %1, %cst {dimension_numbers = #tpu.dot_dimension_numbers<[1], [0], [0], [1], [0, 0, 1, 1], [], []>, precision = #tpu.contract_precision<fp32>} : vector<4x128xf32>, vector<128x4xf32>, vector<4x4xf32> -> vector<4x4xf32>
    %cst_5 = arith.constant 3.125000e-02 : f32
    %4 = vector.broadcast %cst_5 : f32 to vector<4x4xf32>
    %5 = arith.mulf %3, %4 : vector<4x4xf32>
    %6 = arith.mulf %0, %0 : vector<4x128xf32>
    %cst_6 = arith.constant dense<0.000000e+00> : vector<4x4xf32>
    %7 = tpu.matmul %6, %1, %cst_6 {dimension_numbers = #tpu.dot_dimension_numbers<[1], [0], [0], [1], [0, 0, 1, 1], [], []>, precision = #tpu.contract_precision<fp32>} : vector<4x128xf32>, vector<128x4xf32>, vector<4x4xf32> -> vector<4x4xf32>
    %cst_7 = arith.constant 3.125000e-02 : f32
    %8 = vector.broadcast %cst_7 : f32 to vector<4x4xf32>
    %9 = arith.mulf %7, %8 : vector<4x4xf32>
    %10 = arith.mulf %5, %5 : vector<4x4xf32>
    %11 = arith.subf %9, %10 : vector<4x4xf32>
    %cst_8 = arith.constant 0.000000e+00 : f32
    %12 = vector.broadcast %cst_8 : f32 to vector<4x4xf32>
    %13 = arith.maximumf %11, %12 : vector<4x4xf32>
    %cst_9 = arith.constant 9.99999974E-6 : f32
    %14 = vector.broadcast %cst_9 : f32 to vector<4x4xf32>
    %15 = arith.addf %13, %14 : vector<4x4xf32>
    %16 = math.rsqrt %15 : vector<4x4xf32>
    %cst_10 = arith.constant dense<0.000000e+00> : vector<4x128xf32>
    %17 = tpu.matmul %5, %2, %cst_10 {dimension_numbers = #tpu.dot_dimension_numbers<[1], [0], [0], [1], [0, 0, 1, 1], [], []>, precision = #tpu.contract_precision<fp32>} : vector<4x4xf32>, vector<4x128xf32>, vector<4x128xf32> -> vector<4x128xf32>
    %cst_11 = arith.constant dense<0.000000e+00> : vector<4x128xf32>
    %18 = tpu.matmul %16, %2, %cst_11 {dimension_numbers = #tpu.dot_dimension_numbers<[1], [0], [0], [1], [0, 0, 1, 1], [], []>, precision = #tpu.contract_precision<fp32>} : vector<4x4xf32>, vector<4x128xf32>, vector<4x128xf32> -> vector<4x128xf32>
    %c0_12 = arith.constant 0 : index
    %c0_13 = arith.constant 0 : index
    %19 = vector.load %arg4[%c0_12, %c0_13] : memref<1x128xf32, #tpu.memory_space<vmem>>, vector<1x128xf32>
    %20 = vector.broadcast %19 : vector<1x128xf32> to vector<4x128xf32>
    %21 = arith.mulf %18, %20 : vector<4x128xf32>
    %22 = arith.subf %0, %17 : vector<4x128xf32>
    %23 = arith.mulf %22, %21 : vector<4x128xf32>
    %c0_14 = arith.constant 0 : index
    %c0_15 = arith.constant 0 : index
    %24 = vector.load %arg5[%c0_14, %c0_15] : memref<1x128xf32, #tpu.memory_space<vmem>>, vector<1x128xf32>
    %25 = vector.broadcast %24 : vector<1x128xf32> to vector<4x128xf32>
    %26 = arith.addf %23, %25 : vector<4x128xf32>
    %27 = arith.mulf %26, %26 : vector<4x128xf32>
    %28 = arith.mulf %26, %27 : vector<4x128xf32>
    %cst_16 = arith.constant 4.471500e-02 : f32
    %29 = vector.broadcast %cst_16 : f32 to vector<4x128xf32>
    %30 = arith.mulf %29, %28 : vector<4x128xf32>
    %31 = arith.addf %26, %30 : vector<4x128xf32>
    %cst_17 = arith.constant 0.797884583 : f32
    %32 = vector.broadcast %cst_17 : f32 to vector<4x128xf32>
    %33 = arith.mulf %32, %31 : vector<4x128xf32>
    %34 = math.tanh %33 : vector<4x128xf32>
    %cst_18 = arith.constant 1.000000e+00 : f32
    %35 = vector.broadcast %cst_18 : f32 to vector<4x128xf32>
    %36 = arith.addf %35, %34 : vector<4x128xf32>
    %cst_19 = arith.constant 5.000000e-01 : f32
    %37 = vector.broadcast %cst_19 : f32 to vector<4x128xf32>
    %38 = arith.mulf %37, %36 : vector<4x128xf32>
    %39 = arith.mulf %26, %38 : vector<4x128xf32>
    %c0_20 = arith.constant 0 : index
    %c0_21 = arith.constant 0 : index
    %40 = vector.load %arg6[%c0_20, %c0_21] : memref<4x128xf32, #tpu.memory_space<vmem>>, vector<4x128xf32>
    tpu.vector_store %arg6[%c0_20, %c0_21], %39 {strides = array<i32>} : memref<4x128xf32, #tpu.memory_space<vmem>>, vector<4x128xf32>,
    return
  }
  func.func @transform_0(%arg0: i32) -> (i32, i32) {
    %c0_i32 = arith.constant 0 : i32
    %c0_i32_0 = arith.constant 0 : i32
    return %arg0, %c0_i32 : i32, i32
  }
  func.func @transform_1(%arg0: i32) -> (i32, i32) {
    %c0_i32 = arith.constant 0 : i32
    %c0_i32_0 = arith.constant 0 : i32
    %c0_i32_1 = arith.constant 0 : i32
    return %c0_i32, %c0_i32_0 : i32, i32
  }
  func.func @transform_2(%arg0: i32) -> (i32, i32) {
    %c0_i32 = arith.constant 0 : i32
    %c0_i32_0 = arith.constant 0 : i32
    %c0_i32_1 = arith.constant 0 : i32
    return %c0_i32, %c0_i32_0 : i32, i32
  }
  func.func @transform_3(%arg0: i32) -> (i32, i32) {
    %c0_i32 = arith.constant 0 : i32
    %c0_i32_0 = arith.constant 0 : i32
    %c0_i32_1 = arith.constant 0 : i32
    return %c0_i32, %c0_i32_0 : i32, i32
  }
  func.func @transform_4(%arg0: i32) -> (i32, i32) {
    %c0_i32 = arith.constant 0 : i32
    %c0_i32_0 = arith.constant 0 : i32
    %c0_i32_1 = arith.constant 0 : i32
    return %c0_i32, %c0_i32_0 : i32, i32
  }
  func.func @transform_5(%arg0: i32) -> (i32, i32) {
    %c0_i32 = arith.constant 0 : i32
    %c0_i32_0 = arith.constant 0 : i32
    return %arg0, %c0_i32 : i32, i32
  }
}

</mosaic_0001>

<llo_original>
// kernel: tpu_custom_call.1
$region0: #{tpu_custom_call.1}
  #allocation0 [shape = 'u32[]', space=smem, size = 0x4, offset = 0x4, fixed_abs, tag = 'smem constant byte address 0x4 - core index']
  #allocation1 [shape = 'u32[144,128]{1,0:T(1,128)}', space=vmem, size = 0x12000, scoped, tag = 'internal scratch']
  %s0 = inlined_call_operand.vmem [shape: f32[4,128], index: 0, kind: input, shape index: {}]
  %s1 = inlined_call_operand.vmem [shape: f32[128,4], index: 1, kind: input, shape index: {}]
  %s2 = inlined_call_operand.vmem [shape: f32[4,128], index: 2, kind: input, shape index: {}]
  %s3 = inlined_call_operand.vmem [shape: f32[1,128], index: 3, kind: input, shape index: {}]
  %s4 = inlined_call_operand.vmem [shape: f32[1,128], index: 4, kind: input, shape index: {}]
  %s5 = inlined_call_operand.hbm [shape: f32[4,128], index: 5, kind: output, shape index: {}]
  %s6 = sld [smem:[#allocation0]]
  $region30: #{tpu_custom_call.1} parent=0
    _
  %s8 = ssub.s32 1, %s6
  %s9 = scalar_select 0, %s8, %s6
  $region1: #{tpu_custom_call.1} parent=0
    #allocation2 [shape = 'u8[2048]{0}', space=vmem, size = 0x800, scoped, tag = 'output window, operand 0, single buffered']
    #allocation3 [shape = 's32[1]{0}', space=sflag, size = 0x4, scoped, tag = 'scoped memory for tpu_custom_call.1']
    %10 = vsyncpa [#allocation3], 0
    // Predicated region
    $region2: #{tpu_custom_call.1} parent=1 // pred_check
      _
    $region3: #{tpu_custom_call.1} parent=1 // pred_check_branch
      %12 = sbr.rel (0) target = $region5
    $region4: #{tpu_custom_call.1} parent=1 // pred_region
      _
    $region5: #{tpu_custom_call.1} parent=1 // pred_fallthru
      _
    // Predicated region
    $region6: #{tpu_custom_call.1} parent=1 // pred_check
      _
    $region7: #{tpu_custom_call.1} parent=1 // pred_check_branch
      %14 = sbr.rel (0) target = $region9
    $region8: #{tpu_custom_call.1} parent=1 // pred_region
      _
    $region9: #{tpu_custom_call.1} parent=1 // pred_fallthru
      _
    // Predicated region
    $region10: #{tpu_custom_call.1} parent=1 // pred_check
      _
    $region11: #{tpu_custom_call.1} parent=1 // pred_check_branch
      %16 = sbr.rel (0) target = $region13
    $region12: #{tpu_custom_call.1} parent=1 // pred_region
      _
    $region13: #{tpu_custom_call.1} parent=1 // pred_fallthru
      _
    // Predicated region
    $region14: #{tpu_custom_call.1} parent=1 // pred_check
      _
    $region15: #{tpu_custom_call.1} parent=1 // pred_check_branch
      %18 = sbr.rel (0) target = $region17
    $region16: #{tpu_custom_call.1} parent=1 // pred_region
      _
    $region17: #{tpu_custom_call.1} parent=1 // pred_fallthru
      _
    // Predicated region
    $region18: #{tpu_custom_call.1} parent=1 // pred_check
      _
    $region19: #{tpu_custom_call.1} parent=1 // pred_check_branch
      %20 = sbr.rel (0) target = $region21
    $region20: #{tpu_custom_call.1} parent=1 // pred_region
      _
    $region21: #{tpu_custom_call.1} parent=1 // pred_fallthru
      _
    %v21 = vld [vmem:[%s0] sm:$0xf]
    %v22 = vld [vmem:[%s1] sm:$0xff]
    %v23 = vld [vmem:[%s1 + $0x8] sm:$0xff]
    %v24 = vld [vmem:[%s1 + $0x10] sm:$0xff]
    %v25 = vld [vmem:[%s1 + $0x18] sm:$0xff]
    %v26 = vld [vmem:[%s1 + $0x20] sm:$0xff]
    %v27 = vld [vmem:[%s1 + $0x28] sm:$0xff]
    %v28 = vld [vmem:[%s1 + $0x30] sm:$0xff]
    %v29 = vld [vmem:[%s1 + $0x38] sm:$0xff]
    %v30 = vld [vmem:[%s1 + $0x40] sm:$0xff]
    %v31 = vld [vmem:[%s1 + $0x48] sm:$0xff]
    %v32 = vld [vmem:[%s1 + $0x50] sm:$0xff]
    %v33 = vld [vmem:[%s1 + $0x58] sm:$0xff]
    %v34 = vld [vmem:[%s1 + $0x60] sm:$0xff]
    %v35 = vld [vmem:[%s1 + $0x68] sm:$0xff]
    %v36 = vld [vmem:[%s1 + $0x70] sm:$0xff]
    %v37 = vld [vmem:[%s1 + $0x78] sm:$0xff]
    %v38 = vld [vmem:[%s2] sm:$0xf]
    %39 = vmatprep.subr.mxu0 0.0
    %v40 = vand.u32 %v37, 4294901760
    %41 = vmatpush1.msra.mxu0 %v40
    %42 = vmatprep.subr.mxu0 0.0
    %v43 = vand.u32 %v36, 4294901760
    %44 = vmatpush1.msra.mxu0 %v43
    %45 = vmatprep.subr.mxu0 0.0
    %v46 = vand.u32 %v35, 4294901760
    %47 = vmatpush1.msra.mxu0 %v46
    %48 = vmatprep.subr.mxu0 0.0
    %v49 = vand.u32 %v34, 4294901760
    %50 = vmatpush1.msra.mxu0 %v49
    %51 = vmatprep.subr.mxu0 0.0
    %v52 = vand.u32 %v33, 4294901760
    %53 = vmatpush1.msra.mxu0 %v52
    %54 = vmatprep.subr.mxu0 0.0
    %v55 = vand.u32 %v32, 4294901760
    %56 = vmatpush1.msra.mxu0 %v55
    %57 = vmatprep.subr.mxu0 0.0
    %v58 = vand.u32 %v31, 4294901760
    %59 = vmatpush1.msra.mxu0 %v58
    %60 = vmatprep.subr.mxu0 0.0
    %v61 = vand.u32 %v30, 4294901760
    %62 = vmatpush1.msra.mxu0 %v61
    %63 = vmatprep.subr.mxu0 0.0
    %v64 = vand.u32 %v29, 4294901760
    %65 = vmatpush1.msra.mxu0 %v64
    %66 = vmatprep.subr.mxu0 0.0
    %v67 = vand.u32 %v28, 4294901760
    %68 = vmatpush1.msra.mxu0 %v67
    %69 = vmatprep.subr.mxu0 0.0
    %v70 = vand.u32 %v27, 4294901760
    %71 = vmatpush1.msra.mxu0 %v70
    %72 = vmatprep.subr.mxu0 0.0
    %v73 = vand.u32 %v26, 4294901760
    %74 = vmatpush1.msra.mxu0 %v73
    %75 = vmatprep.subr.mxu0 0.0
    %v76 = vand.u32 %v25, 4294901760
    %77 = vmatpush1.msra.mxu0 %v76
    %78 = vmatprep.subr.mxu0 0.0
    %v79 = vand.u32 %v24, 4294901760
    %80 = vmatpush1.msra.mxu0 %v79
    %81 = vmatprep.subr.mxu0 0.0
    %v82 = vand.u32 %v23, 4294901760
    %83 = vmatpush1.msra.mxu0 %v82
    %84 = vmatprep.subr.mxu0 0.0
    %v85 = vand.u32 %v22, 4294901760
    %86 = vmatpush1.msra.mxu0 %v85
    %87 = vmatprep.subr.mxu0 0.0
    %88 = vmatpush2.msra.mxu0 0.0
    %89 = vmatprep.subr.mxu0 0.0
    %90 = vmatpush2.msra.mxu0 0.0
    %91 = vmatprep.subr.mxu0 0.0
    %92 = vmatpush2.msra.mxu0 0.0
    %93 = vmatprep.subr.mxu0 0.0
    %94 = vmatpush2.msra.mxu0 0.0
    %95 = vmatprep.subr.mxu0 0.0
    %96 = vmatpush2.msra.mxu0 0.0
    %97 = vmatprep.subr.mxu0 0.0
    %98 = vmatpush2.msra.mxu0 0.0
    %99 = vmatprep.subr.mxu0 0.0
    %100 = vmatpush2.msra.mxu0 0.0
    %101 = vmatprep.subr.mxu0 0.0
    %102 = vmatpush2.msra.mxu0 0.0
    %103 = vmatprep.subr.mxu0 0.0
    %104 = vmatpush2.msra.mxu0 0.0
    %105 = vmatprep.subr.mxu0 0.0
    %106 = vmatpush2.msra.mxu0 0.0
    %107 = vmatprep.subr.mxu0 0.0
    %108 = vmatpush2.msra.mxu0 0.0
    %109 = vmatprep.subr.mxu0 0.0
    %110 = vmatpush2.msra.mxu0 0.0
    %111 = vmatprep.subr.mxu0 0.0
    %112 = vmatpush2.msra.mxu0 0.0
    %113 = vmatprep.subr.mxu0 0.0
    %114 = vmatpush2.msra.mxu0 0.0
    %115 = vmatprep.subr.mxu0 0.0
    %116 = vmatpush2.msra.mxu0 0.0
    %117 = vmatprep.subr.mxu0 0.0
    %118 = vmatpush2.msra.mxu0 0.0
    %119 = vmatprep.mubr.f32.mxu0 0.0
    %v120 = vand.u32 %v21, 4294901760
    %v121 = vsub.f32 %v21, %v120
    %v122 = vand.u32 %v121, 4294901760
    %v123 = vsub.f32 %v121, %v122
    %v124 = vand.u32 %v123, 4294901760
    %125 = vmatmul.mubr.f32.gmra.mxu0 %v124
    %v126 = vpop.f32.mrf.mxu0
    %v127 = vadd.f32 0.0, %v126
    %v128 = vpop.f32.mrf.mxu0
    %129 = vdwg.mxu0
    %130 = vmatprep.subr.mxu0 0.0
    %v131 = vand.u32 %v37, 4294901760
    %v132 = vsub.f32 %v37, %v131
    %v133 = vand.u32 %v132, 4294901760
    %v134 = vsub.f32 %v132, %v133
    %v135 = vand.u32 %v134, 4294901760
    %136 = vmatpush1.msra.mxu0 %v135
    %137 = vmatprep.subr.mxu0 0.0
    %v138 = vand.u32 %v36, 4294901760
    %v139 = vsub.f32 %v36, %v138
    %v140 = vand.u32 %v139, 4294901760
    %v141 = vsub.f32 %v139, %v140
    %v142 = vand.u32 %v141, 4294901760
    %143 = vmatpush1.msra.mxu0 %v142
    %144 = vmatprep.subr.mxu0 0.0
    %v145 = vand.u32 %v35, 4294901760
    %v146 = vsub.f32 %v35, %v145
    %v147 = vand.u32 %v146, 4294901760
    %v148 = vsub.f32 %v146, %v147
    %v149 = vand.u32 %v148, 4294901760
    %150 = vmatpush1.msra.mxu0 %v149
    %151 = vmatprep.subr.mxu0 0.0
    %v152 = vand.u32 %v34, 4294901760
    %v153 = vsub.f32 %v34, %v152
    %v154 = vand.u32 %v153, 4294901760
    %v155 = vsub.f32 %v153, %v154
    %v156 = vand.u32 %v155, 4294901760
    %157 = vmatpush1.msra.mxu0 %v156
    %158 = vmatprep.subr.mxu0 0.0
    %v159 = vand.u32 %v33, 4294901760
    %v160 = vsub.f32 %v33, %v159
    %v161 = vand.u32 %v160, 4294901760
    %v162 = vsub.f32 %v160, %v161
    %v163 = vand.u32 %v162, 4294901760
    %164 = vmatpush1.msra.mxu0 %v163
    %165 = vmatprep.subr.mxu0 0.0
    %v166 = vand.u32 %v32, 4294901760
    %v167 = vsub.f32 %v32, %v166
    %v168 = vand.u32 %v167, 4294901760
    %v169 = vsub.f32 %v167, %v168
    %v170 = vand.u32 %v169, 4294901760
    %171 = vmatpush1.msra.mxu0 %v170
    %172 = vmatprep.subr.mxu0 0.0
    %v173 = vand.u32 %v31, 4294901760
    %v174 = vsub.f32 %v31, %v173
    %v175 = vand.u32 %v174, 4294901760
    %v176 = vsub.f32 %v174, %v175
    %v177 = vand.u32 %v176, 4294901760
    %178 = vmatpush1.msra.mxu0 %v177
    %179 = vmatprep.subr.mxu0 0.0
    %v180 = vand.u32 %v30, 4294901760
    %v181 = vsub.f32 %v30, %v180
    %v182 = vand.u32 %v181, 4294901760
    %v183 = vsub.f32 %v181, %v182
    %v184 = vand.u32 %v183, 4294901760
    %185 = vmatpush1.msra.mxu0 %v184
    %186 = vmatprep.subr.mxu0 0.0
    %v187 = vand.u32 %v29, 4294901760
    %v188 = vsub.f32 %v29, %v187
    %v189 = vand.u32 %v188, 4294901760
    %v190 = vsub.f32 %v188, %v189
    %v191 = vand.u32 %v190, 4294901760
    %192 = vmatpush1.msra.mxu0 %v191
    %193 = vmatprep.subr.mxu0 0.0
    %v194 = vand.u32 %v28, 4294901760
    %v195 = vsub.f32 %v28, %v194
    %v196 = vand.u32 %v195, 4294901760
    %v197 = vsub.f32 %v195, %v196
    %v198 = vand.u32 %v197, 4294901760
    %199 = vmatpush1.msra.mxu0 %v198
    %200 = vmatprep.subr.mxu0 0.0
    %v201 = vand.u32 %v27, 4294901760
    %v202 = vsub.f32 %v27, %v201
    %v203 = vand.u32 %v202, 4294901760
    %v204 = vsub.f32 %v202, %v203
    %v205 = vand.u32 %v204, 4294901760
    %206 = vmatpush1.msra.mxu0 %v205
    %207 = vmatprep.subr.mxu0 0.0
    %v208 = vand.u32 %v26, 4294901760
    %v209 = vsub.f32 %v26, %v208
    %v210 = vand.u32 %v209, 4294901760
    %v211 = vsub.f32 %v209, %v210
    %v212 = vand.u32 %v211, 4294901760
    %213 = vmatpush1.msra.mxu0 %v212
    %214 = vmatprep.subr.mxu0 0.0
    %v215 = vand.u32 %v25, 4294901760
    %v216 = vsub.f32 %v25, %v215
    %v217 = vand.u32 %v216, 4294901760
    %v218 = vsub.f32 %v216, %v217
    %v219 = vand.u32 %v218, 4294901760
    %220 = vmatpush1.msra.mxu0 %v219
    %221 = vmatprep.subr.mxu0 0.0
    %v222 = vand.u32 %v24, 4294901760
    %v223 = vsub.f32 %v24, %v222
    %v224 = vand.u32 %v223, 4294901760
    %v225 = vsub.f32 %v223, %v224
    %v226 = vand.u32 %v225, 4294901760
    %227 = vmatpush1.msra.mxu0 %v226
    %228 = vmatprep.subr.mxu0 0.0
    %v229 = vand.u32 %v23, 4294901760
    %v230 = vsub.f32 %v23, %v229
    %v231 = vand.u32 %v230, 4294901760
    %v232 = vsub.f32 %v230, %v231
    %v233 = vand.u32 %v232, 4294901760
    %234 = vmatpush1.msra.mxu0 %v233
    %235 = vmatprep.subr.mxu0 0.0
    %v236 = vand.u32 %v22, 4294901760
    %v237 = vsub.f32 %v22, %v236
    %v238 = vand.u32 %v237, 4294901760
    %v239 = vsub.f32 %v237, %v238
    %v240 = vand.u32 %v239, 4294901760
    %241 = vmatpush1.msra.mxu0 %v240
    %242 = vmatprep.subr.mxu0 0.0
    %243 = vmatpush2.msra.mxu0 0.0
    %244 = vmatprep.subr.mxu0 0.0
    %245 = vmatpush2.msra.mxu0 0.0
    %246 = vmatprep.subr.mxu0 0.0
    %247 = vmatpush2.msra.mxu0 0.0
    %248 = vmatprep.subr.mxu0 0.0
    %249 = vmatpush2.msra.mxu0 0.0
    %250 = vmatprep.subr.mxu0 0.0
    %251 = vmatpush2.msra.mxu0 0.0
    %252 = vmatprep.subr.mxu0 0.0
    %253 = vmatpush2.msra.mxu0 0.0
    %254 = vmatprep.subr.mxu0 0.0
    %255 = vmatpush2.msra.mxu0 0.0
    %256 = vmatprep.subr.mxu0 0.0
    %257 = vmatpush2.msra.mxu0 0.0
    %258 = vmatprep.subr.mxu0 0.0
    %259 = vmatpush2.msra.mxu0 0.0
    %260 = vmatprep.subr.mxu0 0.0
    %261 = vmatpush2.msra.mxu0 0.0
    %262 = vmatprep.subr.mxu0 0.0
    %263 = vmatpush2.msra.mxu0 0.0
    %264 = vmatprep.subr.mxu0 0.0
    %265 = vmatpush2.msra.mxu0 0.0
    %266 = vmatprep.subr.mxu0 0.0
    %267 = vmatpush2.msra.mxu0 0.0
    %268 = vmatprep.subr.mxu0 0.0
    %269 = vmatpush2.msra.mxu0 0.0
    %270 = vmatprep.subr.mxu0 0.0
    %271 = vmatpush2.msra.mxu0 0.0
    %272 = vmatprep.subr.mxu0 0.0
    %273 = vmatpush2.msra.mxu0 0.0
    %274 = vmatprep.mubr.f32.mxu0 0.0
    %v275 = vand.u32 %v21, 4294901760
    %276 = vmatmul.mubr.f32.gmra.mxu0 %v275
    %v277 = vpop.f32.mrf.mxu0
    %v278 = vadd.f32 %v127, %v277
    %v279 = vpop.f32.mrf.mxu0
    %280 = vdwg.mxu0
    %281 = vmatprep.subr.mxu0 0.0
    %v282 = vand.u32 %v37, 4294901760
    %v283 = vsub.f32 %v37, %v282
    %284 = vmatpush1.msra.mxu0 %v283
    %285 = vmatprep.subr.mxu0 0.0
    %v286 = vand.u32 %v36, 4294901760
    %v287 = vsub.f32 %v36, %v286
    %288 = vmatpush1.msra.mxu0 %v287
    %289 = vmatprep.subr.mxu0 0.0
    %v290 = vand.u32 %v35, 4294901760
    %v291 = vsub.f32 %v35, %v290
    %292 = vmatpush1.msra.mxu0 %v291
    %293 = vmatprep.subr.mxu0 0.0
    %v294 = vand.u32 %v34, 4294901760
    %v295 = vsub.f32 %v34, %v294
    %296 = vmatpush1.msra.mxu0 %v295
    %297 = vmatprep.subr.mxu0 0.0
    %v298 = vand.u32 %v33, 4294901760
    %v299 = vsub.f32 %v33, %v298
    %300 = vmatpush1.msra.mxu0 %v299
    %301 = vmatprep.subr.mxu0 0.0
    %v302 = vand.u32 %v32, 4294901760
    %v303 = vsub.f32 %v32, %v302
    %304 = vmatpush1.msra.mxu0 %v303
    %305 = vmatprep.subr.mxu0 0.0
    %v306 = vand.u32 %v31, 4294901760
    %v307 = vsub.f32 %v31, %v306
    %308 = vmatpush1.msra.mxu0 %v307
    %309 = vmatprep.subr.mxu0 0.0
    %v310 = vand.u32 %v30, 4294901760
    %v311 = vsub.f32 %v30, %v310
    %312 = vmatpush1.msra.mxu0 %v311
    %313 = vmatprep.subr.mxu0 0.0
    %v314 = vand.u32 %v29, 4294901760
    %v315 = vsub.f32 %v29, %v314
    %316 = vmatpush1.msra.mxu0 %v315
    %317 = vmatprep.subr.mxu0 0.0
    %v318 = vand.u32 %v28, 4294901760
    %v319 = vsub.f32 %v28, %v318
    %320 = vmatpush1.msra.mxu0 %v319
    %321 = vmatprep.subr.mxu0 0.0
    %v322 = vand.u32 %v27, 4294901760
    %v323 = vsub.f32 %v27, %v322
    %324 = vmatpush1.msra.mxu0 %v323
    %325 = vmatprep.subr.mxu0 0.0
    %v326 = vand.u32 %v26, 4294901760
    %v327 = vsub.f32 %v26, %v326
    %328 = vmatpush1.msra.mxu0 %v327
    %329 = vmatprep.subr.mxu0 0.0
    %v330 = vand.u32 %v25, 4294901760
    %v331 = vsub.f32 %v25, %v330
    %332 = vmatpush1.msra.mxu0 %v331
    %333 = vmatprep.subr.mxu0 0.0
    %v334 = vand.u32 %v24, 4294901760
    %v335 = vsub.f32 %v24, %v334
    %336 = vmatpush1.msra.mxu0 %v335
    %337 = vmatprep.subr.mxu0 0.0
    %v338 = vand.u32 %v23, 4294901760
    %v339 = vsub.f32 %v23, %v338
    %340 = vmatpush1.msra.mxu0 %v339
    %341 = vmatprep.subr.mxu0 0.0
    %v342 = vand.u32 %v22, 4294901760
    %v343 = vsub.f32 %v22, %v342
    %344 = vmatpush1.msra.mxu0 %v343
    %345 = vmatprep.subr.mxu0 0.0
    %346 = vmatpush2.msra.mxu0 0.0
    %347 = vmatprep.subr.mxu0 0.0
    %348 = vmatpush2.msra.mxu0 0.0
    %349 = vmatprep.subr.mxu0 0.0
    %350 = vmatpush2.msra.mxu0 0.0
    %351 = vmatprep.subr.mxu0 0.0
    %352 = vmatpush2.msra.mxu0 0.0
    %353 = vmatprep.subr.mxu0 0.0
    %354 = vmatpush2.msra.mxu0 0.0
    %355 = vmatprep.subr.mxu0 0.0
    %356 = vmatpush2.msra.mxu0 0.0
    %357 = vmatprep.subr.mxu0 0.0
    %358 = vmatpush2.msra.mxu0 0.0
    %359 = vmatprep.subr.mxu0 0.0
    %360 = vmatpush2.msra.mxu0 0.0
    %361 = vmatprep.subr.mxu0 0.0
    %362 = vmatpush2.msra.mxu0 0.0
    %363 = vmatprep.subr.mxu0 0.0
    %364 = vmatpush2.msra.mxu0 0.0
    %365 = vmatprep.subr.mxu0 0.0
    %366 = vmatpush2.msra.mxu0 0.0
    %367 = vmatprep.subr.mxu0 0.0
    %368 = vmatpush2.msra.mxu0 0.0
    %369 = vmatprep.subr.mxu0 0.0
    %370 = vmatpush2.msra.mxu0 0.0
    %371 = vmatprep.subr.mxu0 0.0
    %372 = vmatpush2.msra.mxu0 0.0
    %373 = vmatprep.subr.mxu0 0.0
    %374 = vmatpush2.msra.mxu0 0.0
    %375 = vmatprep.subr.mxu0 0.0
    %376 = vmatpush2.msra.mxu0 0.0
    %377 = vmatprep.mubr.f32.mxu0 0.0
    %v378 = vand.u32 %v21, 4294901760
    %v379 = vsub.f32 %v21, %v378
    %380 = vmatmul.mubr.f32.gmra.mxu0 %v379
    %v381 = vpop.f32.mrf.mxu0
    %v382 = vadd.f32 %v278, %v381
    %v383 = vpop.f32.mrf.mxu0
    %384 = vdwg.mxu0
    %385 = vmatprep.subr.mxu0 0.0
    %v386 = vand.u32 %v37, 4294901760
    %387 = vmatpush1.msra.mxu0 %v386
    %388 = vmatprep.subr.mxu0 0.0
    %v389 = vand.u32 %v36, 4294901760
    %390 = vmatpush1.msra.mxu0 %v389
    %391 = vmatprep.subr.mxu0 0.0
    %v392 = vand.u32 %v35, 4294901760
    %393 = vmatpush1.msra.mxu0 %v392
    %394 = vmatprep.subr.mxu0 0.0
    %v395 = vand.u32 %v34, 4294901760
    %396 = vmatpush1.msra.mxu0 %v395
    %397 = vmatprep.subr.mxu0 0.0
    %v398 = vand.u32 %v33, 4294901760
    %399 = vmatpush1.msra.mxu0 %v398
    %400 = vmatprep.subr.mxu0 0.0
    %v401 = vand.u32 %v32, 4294901760
    %402 = vmatpush1.msra.mxu0 %v401
    %403 = vmatprep.subr.mxu0 0.0
    %v404 = vand.u32 %v31, 4294901760
    %405 = vmatpush1.msra.mxu0 %v404
    %406 = vmatprep.subr.mxu0 0.0
    %v407 = vand.u32 %v30, 4294901760
    %408 = vmatpush1.msra.mxu0 %v407
    %409 = vmatprep.subr.mxu0 0.0
    %v410 = vand.u32 %v29, 4294901760
    %411 = vmatpush1.msra.mxu0 %v410
    %412 = vmatprep.subr.mxu0 0.0
    %v413 = vand.u32 %v28, 4294901760
    %414 = vmatpush1.msra.mxu0 %v413
    %415 = vmatprep.subr.mxu0 0.0
    %v416 = vand.u32 %v27, 4294901760
    %417 = vmatpush1.msra.mxu0 %v416
    %418 = vmatprep.subr.mxu0 0.0
    %v419 = vand.u32 %v26, 4294901760
    %420 = vmatpush1.msra.mxu0 %v419
    %421 = vmatprep.subr.mxu0 0.0
    %v422 = vand.u32 %v25, 4294901760
    %423 = vmatpush1.msra.mxu0 %v422
    %424 = vmatprep.subr.mxu0 0.0
    %v425 = vand.u32 %v24, 4294901760
    %426 = vmatpush1.msra.mxu0 %v425
    %427 = vmatprep.subr.mxu0 0.0
    %v428 = vand.u32 %v23, 4294901760
    %429 = vmatpush1.msra.mxu0 %v428
    %430 = vmatprep.subr.mxu0 0.0
    %v431 = vand.u32 %v22, 4294901760
    %432 = vmatpush1.msra.mxu0 %v431
    %433 = vmatprep.subr.mxu0 0.0
    %434 = vmatpush2.msra.mxu0 0.0
    %435 = vmatprep.subr.mxu0 0.0
    %436 = vmatpush2.msra.mxu0 0.0
    %437 = vmatprep.subr.mxu0 0.0
    %438 = vmatpush2.msra.mxu0 0.0
    %439 = vmatprep.subr.mxu0 0.0
    %440 = vmatpush2.msra.mxu0 0.0
    %441 = vmatprep.subr.mxu0 0.0
    %442 = vmatpush2.msra.mxu0 0.0
    %443 = vmatprep.subr.mxu0 0.0
    %444 = vmatpush2.msra.mxu0 0.0
    %445 = vmatprep.subr.mxu0 0.0
    %446 = vmatpush2.msra.mxu0 0.0
    %447 = vmatprep.subr.mxu0 0.0
    %448 = vmatpush2.msra.mxu0 0.0
    %449 = vmatprep.subr.mxu0 0.0
    %450 = vmatpush2.msra.mxu0 0.0
    %451 = vmatprep.subr.mxu0 0.0
    %452 = vmatpush2.msra.mxu0 0.0
    %453 = vmatprep.subr.mxu0 0.0
    %454 = vmatpush2.msra.mxu0 0.0
    %455 = vmatprep.subr.mxu0 0.0
    %456 = vmatpush2.msra.mxu0 0.0
    %457 = vmatprep.subr.mxu0 0.0
    %458 = vmatpush2.msra.mxu0 0.0
    %459 = vmatprep.subr.mxu0 0.0
    %460 = vmatpush2.msra.mxu0 0.0
    %461 = vmatprep.subr.mxu0 0.0
    %462 = vmatpush2.msra.mxu0 0.0
    %463 = vmatprep.subr.mxu0 0.0
    %464 = vmatpush2.msra.mxu0 0.0
    %465 = vmatprep.mubr.f32.mxu0 0.0
    %v466 = vand.u32 %v21, 4294901760
    %v467 = vsub.f32 %v21, %v466
    %v468 = vand.u32 %v467, 4294901760
    %469 = vmatmul.mubr.f32.gmra.mxu0 %v468
    %v470 = vpop.f32.mrf.mxu0
    %v471 = vadd.f32 %v382, %v470
    %v472 = vpop.f32.mrf.mxu0
    %473 = vdwg.mxu0
    %474 = vmatprep.subr.mxu0 0.0
    %v475 = vand.u32 %v37, 4294901760
    %v476 = vsub.f32 %v37, %v475
    %v477 = vand.u32 %v476, 4294901760
    %478 = vmatpush1.msra.mxu0 %v477
    %479 = vmatprep.subr.mxu0 0.0
    %v480 = vand.u32 %v36, 4294901760
    %v481 = vsub.f32 %v36, %v480
    %v482 = vand.u32 %v481, 4294901760
    %483 = vmatpush1.msra.mxu0 %v482
    %484 = vmatprep.subr.mxu0 0.0
    %v485 = vand.u32 %v35, 4294901760
    %v486 = vsub.f32 %v35, %v485
    %v487 = vand.u32 %v486, 4294901760
    %488 = vmatpush1.msra.mxu0 %v487
    %489 = vmatprep.subr.mxu0 0.0
    %v490 = vand.u32 %v34, 4294901760
    %v491 = vsub.f32 %v34, %v490
    %v492 = vand.u32 %v491, 4294901760
    %493 = vmatpush1.msra.mxu0 %v492
    %494 = vmatprep.subr.mxu0 0.0
    %v495 = vand.u32 %v33, 4294901760
    %v496 = vsub.f32 %v33, %v495
    %v497 = vand.u32 %v496, 4294901760
    %498 = vmatpush1.msra.mxu0 %v497
    %499 = vmatprep.subr.mxu0 0.0
    %v500 = vand.u32 %v32, 4294901760
    %v501 = vsub.f32 %v32, %v500
    %v502 = vand.u32 %v501, 4294901760
    %503 = vmatpush1.msra.mxu0 %v502
    %504 = vmatprep.subr.mxu0 0.0
    %v505 = vand.u32 %v31, 4294901760
    %v506 = vsub.f32 %v31, %v505
    %v507 = vand.u32 %v506, 4294901760
    %508 = vmatpush1.msra.mxu0 %v507
    %509 = vmatprep.subr.mxu0 0.0
    %v510 = vand.u32 %v30, 4294901760
    %v511 = vsub.f32 %v30, %v510
    %v512 = vand.u32 %v511, 4294901760
    %513 = vmatpush1.msra.mxu0 %v512
    %514 = vmatprep.subr.mxu0 0.0
    %v515 = vand.u32 %v29, 4294901760
    %v516 = vsub.f32 %v29, %v515
    %v517 = vand.u32 %v516, 4294901760
    %518 = vmatpush1.msra.mxu0 %v517
    %519 = vmatprep.subr.mxu0 0.0
    %v520 = vand.u32 %v28, 4294901760
    %v521 = vsub.f32 %v28, %v520
    %v522 = vand.u32 %v521, 4294901760
    %523 = vmatpush1.msra.mxu0 %v522
    %524 = vmatprep.subr.mxu0 0.0
    %v525 = vand.u32 %v27, 4294901760
    %v526 = vsub.f32 %v27, %v525
    %v527 = vand.u32 %v526, 4294901760
    %528 = vmatpush1.msra.mxu0 %v527
    %529 = vmatprep.subr.mxu0 0.0
    %v530 = vand.u32 %v26, 4294901760
    %v531 = vsub.f32 %v26, %v530
    %v532 = vand.u32 %v531, 4294901760
    %533 = vmatpush1.msra.mxu0 %v532
    %534 = vmatprep.subr.mxu0 0.0
    %v535 = vand.u32 %v25, 4294901760
    %v536 = vsub.f32 %v25, %v535
    %v537 = vand.u32 %v536, 4294901760
    %538 = vmatpush1.msra.mxu0 %v537
    %539 = vmatprep.subr.mxu0 0.0
    %v540 = vand.u32 %v24, 4294901760
    %v541 = vsub.f32 %v24, %v540
    %v542 = vand.u32 %v541, 4294901760
    %543 = vmatpush1.msra.mxu0 %v542
    %544 = vmatprep.subr.mxu0 0.0
    %v545 = vand.u32 %v23, 4294901760
    %v546 = vsub.f32 %v23, %v545
    %v547 = vand.u32 %v546, 4294901760
    %548 = vmatpush1.msra.mxu0 %v547
    %549 = vmatprep.subr.mxu0 0.0
    %v550 = vand.u32 %v22, 4294901760
    %v551 = vsub.f32 %v22, %v550
    %v552 = vand.u32 %v551, 4294901760
    %553 = vmatpush1.msra.mxu0 %v552
    %554 = vmatprep.subr.mxu0 0.0
    %555 = vmatpush2.msra.mxu0 0.0
    %556 = vmatprep.subr.mxu0 0.0
    %557 = vmatpush2.msra.mxu0 0.0
    %558 = vmatprep.subr.mxu0 0.0
    %559 = vmatpush2.msra.mxu0 0.0
    %560 = vmatprep.subr.mxu0 0.0
    %561 = vmatpush2.msra.mxu0 0.0
    %562 = vmatprep.subr.mxu0 0.0
    %563 = vmatpush2.msra.mxu0 0.0
    %564 = vmatprep.subr.mxu0 0.0
    %565 = vmatpush2.msra.mxu0 0.0
    %566 = vmatprep.subr.mxu0 0.0
    %567 = vmatpush2.msra.mxu0 0.0
    %568 = vmatprep.subr.mxu0 0.0
    %569 = vmatpush2.msra.mxu0 0.0
    %570 = vmatprep.subr.mxu0 0.0
    %571 = vmatpush2.msra.mxu0 0.0
    %572 = vmatprep.subr.mxu0 0.0
    %573 = vmatpush2.msra.mxu0 0.0
    %574 = vmatprep.subr.mxu0 0.0
    %575 = vmatpush2.msra.mxu0 0.0
    %576 = vmatprep.subr.mxu0 0.0
    %577 = vmatpush2.msra.mxu0 0.0
    %578 = vmatprep.subr.mxu0 0.0
    %579 = vmatpush2.msra.mxu0 0.0
    %580 = vmatprep.subr.mxu0 0.0
    %581 = vmatpush2.msra.mxu0 0.0
    %582 = vmatprep.subr.mxu0 0.0
    %583 = vmatpush2.msra.mxu0 0.0
    %584 = vmatprep.subr.mxu0 0.0
    %585 = vmatpush2.msra.mxu0 0.0
    %586 = vmatprep.mubr.f32.mxu0 0.0
    %v587 = vand.u32 %v21, 4294901760
    %588 = vmatmul.mubr.f32.gmra.mxu0 %v587
    %v589 = vpop.f32.mrf.mxu0
    %v590 = vadd.f32 %v471, %v589
    %v591 = vpop.f32.mrf.mxu0
    %592 = vdwg.mxu0
    %593 = vmatprep.subr.mxu0 0.0
    %v594 = vand.u32 %v37, 4294901760
    %595 = vmatpush1.msra.mxu0 %v594
    %596 = vmatprep.subr.mxu0 0.0
    %v597 = vand.u32 %v36, 4294901760
    %598 = vmatpush1.msra.mxu0 %v597
    %599 = vmatprep.subr.mxu0 0.0
    %v600 = vand.u32 %v35, 4294901760
    %601 = vmatpush1.msra.mxu0 %v600
    %602 = vmatprep.subr.mxu0 0.0
    %v603 = vand.u32 %v34, 4294901760
    %604 = vmatpush1.msra.mxu0 %v603
    %605 = vmatprep.subr.mxu0 0.0
    %v606 = vand.u32 %v33, 4294901760
    %607 = vmatpush1.msra.mxu0 %v606
    %608 = vmatprep.subr.mxu0 0.0
    %v609 = vand.u32 %v32, 4294901760
    %610 = vmatpush1.msra.mxu0 %v609
    %611 = vmatprep.subr.mxu0 0.0
    %v612 = vand.u32 %v31, 4294901760
    %613 = vmatpush1.msra.mxu0 %v612
    %614 = vmatprep.subr.mxu0 0.0
    %v615 = vand.u32 %v30, 4294901760
    %616 = vmatpush1.msra.mxu0 %v615
    %617 = vmatprep.subr.mxu0 0.0
    %v618 = vand.u32 %v29, 4294901760
    %619 = vmatpush1.msra.mxu0 %v618
    %620 = vmatprep.subr.mxu0 0.0
    %v621 = vand.u32 %v28, 4294901760
    %622 = vmatpush1.msra.mxu0 %v621
    %623 = vmatprep.subr.mxu0 0.0
    %v624 = vand.u32 %v27, 4294901760
    %625 = vmatpush1.msra.mxu0 %v624
    %626 = vmatprep.subr.mxu0 0.0
    %v627 = vand.u32 %v26, 4294901760
    %628 = vmatpush1.msra.mxu0 %v627
    %629 = vmatprep.subr.mxu0 0.0
    %v630 = vand.u32 %v25, 4294901760
    %631 = vmatpush1.msra.mxu0 %v630
    %632 = vmatprep.subr.mxu0 0.0
    %v633 = vand.u32 %v24, 4294901760
    %634 = vmatpush1.msra.mxu0 %v633
    %635 = vmatprep.subr.mxu0 0.0
    %v636 = vand.u32 %v23, 4294901760
    %637 = vmatpush1.msra.mxu0 %v636
    %638 = vmatprep.subr.mxu0 0.0
    %v639 = vand.u32 %v22, 4294901760
    %640 = vmatpush1.msra.mxu0 %v639
    %641 = vmatprep.subr.mxu0 0.0
    %642 = vmatpush2.msra.mxu0 0.0
    %643 = vmatprep.subr.mxu0 0.0
    %644 = vmatpush2.msra.mxu0 0.0
    %645 = vmatprep.subr.mxu0 0.0
    %646 = vmatpush2.msra.mxu0 0.0
    %647 = vmatprep.subr.mxu0 0.0
    %648 = vmatpush2.msra.mxu0 0.0
    %649 = vmatprep.subr.mxu0 0.0
    %650 = vmatpush2.msra.mxu0 0.0
    %651 = vmatprep.subr.mxu0 0.0
    %652 = vmatpush2.msra.mxu0 0.0
    %653 = vmatprep.subr.mxu0 0.0
    %654 = vmatpush2.msra.mxu0 0.0
    %655 = vmatprep.subr.mxu0 0.0
    %656 = vmatpush2.msra.mxu0 0.0
    %657 = vmatprep.subr.mxu0 0.0
    %658 = vmatpush2.msra.mxu0 0.0
    %659 = vmatprep.subr.mxu0 0.0
    %660 = vmatpush2.msra.mxu0 0.0
    %661 = vmatprep.subr.mxu0 0.0
    %662 = vmatpush2.msra.mxu0 0.0
    %663 = vmatprep.subr.mxu0 0.0
    %664 = vmatpush2.msra.mxu0 0.0
    %665 = vmatprep.subr.mxu0 0.0
    %666 = vmatpush2.msra.mxu0 0.0
    %667 = vmatprep.subr.mxu0 0.0
    %668 = vmatpush2.msra.mxu0 0.0
    %669 = vmatprep.subr.mxu0 0.0
    %670 = vmatpush2.msra.mxu0 0.0
    %671 = vmatprep.subr.mxu0 0.0
    %672 = vmatpush2.msra.mxu0 0.0
    %673 = vmatprep.mubr.f32.mxu0 0.0
    %v674 = vand.u32 %v21, 4294901760
    %675 = vmatmul.mubr.f32.gmra.mxu0 %v674
    %v676 = vpop.f32.mrf.mxu0
    %v677 = vadd.f32 %v590, %v676
    %v678 = vpop.f32.mrf.mxu0
    %679 = vdwg.mxu0
    %v680 = vmul.f32 %v677, 0.03125
    %v681 = vmul.f32 %v21, %v21
    %682 = vmatprep.subr.mxu0 0.0
    %v683 = vand.u32 %v37, 4294901760
    %684 = vmatpush1.msra.mxu0 %v683
    %685 = vmatprep.subr.mxu0 0.0
    %v686 = vand.u32 %v36, 4294901760
    %687 = vmatpush1.msra.mxu0 %v686
    %688 = vmatprep.subr.mxu0 0.0
    %v689 = vand.u32 %v35, 4294901760
    %690 = vmatpush1.msra.mxu0 %v689
    %691 = vmatprep.subr.mxu0 0.0
    %v692 = vand.u32 %v34, 4294901760
    %693 = vmatpush1.msra.mxu0 %v692
    %694 = vmatprep.subr.mxu0 0.0
    %v695 = vand.u32 %v33, 4294901760
    %696 = vmatpush1.msra.mxu0 %v695
    %697 = vmatprep.subr.mxu0 0.0
    %v698 = vand.u32 %v32, 4294901760
    %699 = vmatpush1.msra.mxu0 %v698
    %700 = vmatprep.subr.mxu0 0.0
    %v701 = vand.u32 %v31, 4294901760
    %702 = vmatpush1.msra.mxu0 %v701
    %703 = vmatprep.subr.mxu0 0.0
    %v704 = vand.u32 %v30, 4294901760
    %705 = vmatpush1.msra.mxu0 %v704
    %706 = vmatprep.subr.mxu0 0.0
    %v707 = vand.u32 %v29, 4294901760
    %708 = vmatpush1.msra.mxu0 %v707
    %709 = vmatprep.subr.mxu0 0.0
    %v710 = vand.u32 %v28, 4294901760
    %711 = vmatpush1.msra.mxu0 %v710
    %712 = vmatprep.subr.mxu0 0.0
    %v713 = vand.u32 %v27, 4294901760
    %714 = vmatpush1.msra.mxu0 %v713
    %715 = vmatprep.subr.mxu0 0.0
    %v716 = vand.u32 %v26, 4294901760
    %717 = vmatpush1.msra.mxu0 %v716
    %718 = vmatprep.subr.mxu0 0.0
    %v719 = vand.u32 %v25, 4294901760
    %720 = vmatpush1.msra.mxu0 %v719
    %721 = vmatprep.subr.mxu0 0.0
    %v722 = vand.u32 %v24, 4294901760
    %723 = vmatpush1.msra.mxu0 %v722
    %724 = vmatprep.subr.mxu0 0.0
    %v725 = vand.u32 %v23, 4294901760
    %726 = vmatpush1.msra.mxu0 %v725
    %727 = vmatprep.subr.mxu0 0.0
    %v728 = vand.u32 %v22, 4294901760
    %729 = vmatpush1.msra.mxu0 %v728
    %730 = vmatprep.subr.mxu0 0.0
    %731 = vmatpush2.msra.mxu0 0.0
    %732 = vmatprep.subr.mxu0 0.0
    %733 = vmatpush2.msra.mxu0 0.0
    %734 = vmatprep.subr.mxu0 0.0
    %735 = vmatpush2.msra.mxu0 0.0
    %736 = vmatprep.subr.mxu0 0.0
    %737 = vmatpush2.msra.mxu0 0.0
    %738 = vmatprep.subr.mxu0 0.0
    %739 = vmatpush2.msra.mxu0 0.0
    %740 = vmatprep.subr.mxu0 0.0
    %741 = vmatpush2.msra.mxu0 0.0
    %742 = vmatprep.subr.mxu0 0.0
    %743 = vmatpush2.msra.mxu0 0.0
    %744 = vmatprep.subr.mxu0 0.0
    %745 = vmatpush2.msra.mxu0 0.0
    %746 = vmatprep.subr.mxu0 0.0
    %747 = vmatpush2.msra.mxu0 0.0
    %748 = vmatprep.subr.mxu0 0.0
    %749 = vmatpush2.msra.mxu0 0.0
    %750 = vmatprep.subr.mxu0 0.0
    %751 = vmatpush2.msra.mxu0 0.0
    %752 = vmatprep.subr.mxu0 0.0
    %753 = vmatpush2.msra.mxu0 0.0
    %754 = vmatprep.subr.mxu0 0.0
    %755 = vmatpush2.msra.mxu0 0.0
    %756 = vmatprep.subr.mxu0 0.0
    %757 = vmatpush2.msra.mxu0 0.0
    %758 = vmatprep.subr.mxu0 0.0
    %759 = vmatpush2.msra.mxu0 0.0
    %760 = vmatprep.subr.mxu0 0.0
    %761 = vmatpush2.msra.mxu0 0.0
    %762 = vmatprep.mubr.f32.mxu0 0.0
    %v763 = vand.u32 %v681, 4294901760
    %v764 = vsub.f32 %v681, %v763
    %v765 = vand.u32 %v764, 4294901760
    %v766 = vsub.f32 %v764, %v765
    %v767 = vand.u32 %v766, 4294901760
    %768 = vmatmul.mubr.f32.gmra.mxu0 %v767
    %v769 = vpop.f32.mrf.mxu0
    %v770 = vadd.f32 0.0, %v769
    %v771 = vpop.f32.mrf.mxu0
    %772 = vdwg.mxu0
    %773 = vmatprep.subr.mxu0 0.0
    %v774 = vand.u32 %v37, 4294901760
    %v775 = vsub.f32 %v37, %v774
    %v776 = vand.u32 %v775, 4294901760
    %v777 = vsub.f32 %v775, %v776
    %v778 = vand.u32 %v777, 4294901760
    %779 = vmatpush1.msra.mxu0 %v778
    %780 = vmatprep.subr.mxu0 0.0
    %v781 = vand.u32 %v36, 4294901760
    %v782 = vsub.f32 %v36, %v781
    %v783 = vand.u32 %v782, 4294901760
    %v784 = vsub.f32 %v782, %v783
    %v785 = vand.u32 %v784, 4294901760
    %786 = vmatpush1.msra.mxu0 %v785
    %787 = vmatprep.subr.mxu0 0.0
    %v788 = vand.u32 %v35, 4294901760
    %v789 = vsub.f32 %v35, %v788
    %v790 = vand.u32 %v789, 4294901760
    %v791 = vsub.f32 %v789, %v790
    %v792 = vand.u32 %v791, 4294901760
    %793 = vmatpush1.msra.mxu0 %v792
    %794 = vmatprep.subr.mxu0 0.0
    %v795 = vand.u32 %v34, 4294901760
    %v796 = vsub.f32 %v34, %v795
    %v797 = vand.u32 %v796, 4294901760
    %v798 = vsub.f32 %v796, %v797
    %v799 = vand.u32 %v798, 4294901760
    %800 = vmatpush1.msra.mxu0 %v799
    %801 = vmatprep.subr.mxu0 0.0
    %v802 = vand.u32 %v33, 4294901760
    %v803 = vsub.f32 %v33, %v802
    %v804 = vand.u32 %v803, 4294901760
    %v805 = vsub.f32 %v803, %v804
    %v806 = vand.u32 %v805, 4294901760
    %807 = vmatpush1.msra.mxu0 %v806
    %808 = vmatprep.subr.mxu0 0.0
    %v809 = vand.u32 %v32, 4294901760
    %v810 = vsub.f32 %v32, %v809
    %v811 = vand.u32 %v810, 4294901760
    %v812 = vsub.f32 %v810, %v811
    %v813 = vand.u32 %v812, 4294901760
    %814 = vmatpush1.msra.mxu0 %v813
    %815 = vmatprep.subr.mxu0 0.0
    %v816 = vand.u32 %v31, 4294901760
    %v817 = vsub.f32 %v31, %v816
    %v818 = vand.u32 %v817, 4294901760
    %v819 = vsub.f32 %v817, %v818
    %v820 = vand.u32 %v819, 4294901760
    %821 = vmatpush1.msra.mxu0 %v820
    %822 = vmatprep.subr.mxu0 0.0
    %v823 = vand.u32 %v30, 4294901760
    %v824 = vsub.f32 %v30, %v823
    %v825 = vand.u32 %v824, 4294901760
    %v826 = vsub.f32 %v824, %v825
    %v827 = vand.u32 %v826, 4294901760
    %828 = vmatpush1.msra.mxu0 %v827
    %829 = vmatprep.subr.mxu0 0.0
    %v830 = vand.u32 %v29, 4294901760
    %v831 = vsub.f32 %v29, %v830
    %v832 = vand.u32 %v831, 4294901760
    %v833 = vsub.f32 %v831, %v832
    %v834 = vand.u32 %v833, 4294901760
    %835 = vmatpush1.msra.mxu0 %v834
    %836 = vmatprep.subr.mxu0 0.0
    %v837 = vand.u32 %v28, 4294901760
    %v838 = vsub.f32 %v28, %v837
    %v839 = vand.u32 %v838, 4294901760
    %v840 = vsub.f32 %v838, %v839
    %v841 = vand.u32 %v840, 4294901760
    %842 = vmatpush1.msra.mxu0 %v841
    %843 = vmatprep.subr.mxu0 0.0
    %v844 = vand.u32 %v27, 4294901760
    %v845 = vsub.f32 %v27, %v844
    %v846 = vand.u32 %v845, 4294901760
    %v847 = vsub.f32 %v845, %v846
    %v848 = vand.u32 %v847, 4294901760
    %849 = vmatpush1.msra.mxu0 %v848
    %850 = vmatprep.subr.mxu0 0.0
    %v851 = vand.u32 %v26, 4294901760
    %v852 = vsub.f32 %v26, %v851
    %v853 = vand.u32 %v852, 4294901760
    %v854 = vsub.f32 %v852, %v853
    %v855 = vand.u32 %v854, 4294901760
    %856 = vmatpush1.msra.mxu0 %v855
    %857 = vmatprep.subr.mxu0 0.0
    %v858 = vand.u32 %v25, 4294901760
    %v859 = vsub.f32 %v25, %v858
    %v860 = vand.u32 %v859, 4294901760
    %v861 = vsub.f32 %v859, %v860
    %v862 = vand.u32 %v861, 4294901760
    %863 = vmatpush1.msra.mxu0 %v862
    %864 = vmatprep.subr.mxu0 0.0
    %v865 = vand.u32 %v24, 4294901760
    %v866 = vsub.f32 %v24, %v865
    %v867 = vand.u32 %v866, 4294901760
    %v868 = vsub.f32 %v866, %v867
    %v869 = vand.u32 %v868, 4294901760
    %870 = vmatpush1.msra.mxu0 %v869
    %871 = vmatprep.subr.mxu0 0.0
    %v872 = vand.u32 %v23, 4294901760
    %v873 = vsub.f32 %v23, %v872
    %v874 = vand.u32 %v873, 4294901760
    %v875 = vsub.f32 %v873, %v874
    %v876 = vand.u32 %v875, 4294901760
    %877 = vmatpush1.msra.mxu0 %v876
    %878 = vmatprep.subr.mxu0 0.0
    %v879 = vand.u32 %v22, 4294901760
    %v880 = vsub.f32 %v22, %v879
    %v881 = vand.u32 %v880, 4294901760
    %v882 = vsub.f32 %v880, %v881
    %v883 = vand.u32 %v882, 4294901760
    %884 = vmatpush1.msra.mxu0 %v883
    %885 = vmatprep.subr.mxu0 0.0
    %886 = vmatpush2.msra.mxu0 0.0
    %887 = vmatprep.subr.mxu0 0.0
    %888 = vmatpush2.msra.mxu0 0.0
    %889 = vmatprep.subr.mxu0 0.0
    %890 = vmatpush2.msra.mxu0 0.0
    %891 = vmatprep.subr.mxu0 0.0
    %892 = vmatpush2.msra.mxu0 0.0
    %893 = vmatprep.subr.mxu0 0.0
    %894 = vmatpush2.msra.mxu0 0.0
    %895 = vmatprep.subr.mxu0 0.0
    %896 = vmatpush2.msra.mxu0 0.0
    %897 = vmatprep.subr.mxu0 0.0
    %898 = vmatpush2.msra.mxu0 0.0
    %899 = vmatprep.subr.mxu0 0.0
    %900 = vmatpush2.msra.mxu0 0.0
    %901 = vmatprep.subr.mxu0 0.0
    %902 = vmatpush2.msra.mxu0 0.0
    %903 = vmatprep.subr.mxu0 0.0
    %904 = vmatpush2.msra.mxu0 0.0
    %905 = vmatprep.subr.mxu0 0.0
    %906 = vmatpush2.msra.mxu0 0.0
    %907 = vmatprep.subr.mxu0 0.0
    %908 = vmatpush2.msra.mxu0 0.0
    %909 = vmatprep.subr.mxu0 0.0
    %910 = vmatpush2.msra.mxu0 0.0
    %911 = vmatprep.subr.mxu0 0.0
    %912 = vmatpush2.msra.mxu0 0.0
    %913 = vmatprep.subr.mxu0 0.0
    %914 = vmatpush2.msra.mxu0 0.0
    %915 = vmatprep.subr.mxu0 0.0
    %916 = vmatpush2.msra.mxu0 0.0
    %917 = vmatprep.mubr.f32.mxu0 0.0
    %v918 = vand.u32 %v681, 4294901760
    %919 = vmatmul.mubr.f32.gmra.mxu0 %v918
    %v920 = vpop.f32.mrf.mxu0
    %v921 = vadd.f32 %v770, %v920
    %v922 = vpop.f32.mrf.mxu0
    %923 = vdwg.mxu0
    %924 = vmatprep.subr.mxu0 0.0
    %v925 = vand.u32 %v37, 4294901760
    %v926 = vsub.f32 %v37, %v925
    %927 = vmatpush1.msra.mxu0 %v926
    %928 = vmatprep.subr.mxu0 0.0
    %v929 = vand.u32 %v36, 4294901760
    %v930 = vsub.f32 %v36, %v929
    %931 = vmatpush1.msra.mxu0 %v930
    %932 = vmatprep.subr.mxu0 0.0
    %v933 = vand.u32 %v35, 4294901760
    %v934 = vsub.f32 %v35, %v933
    %935 = vmatpush1.msra.mxu0 %v934
    %936 = vmatprep.subr.mxu0 0.0
    %v937 = vand.u32 %v34, 4294901760
    %v938 = vsub.f32 %v34, %v937
    %939 = vmatpush1.msra.mxu0 %v938
    %940 = vmatprep.subr.mxu0 0.0
    %v941 = vand.u32 %v33, 4294901760
    %v942 = vsub.f32 %v33, %v941
    %943 = vmatpush1.msra.mxu0 %v942
    %944 = vmatprep.subr.mxu0 0.0
    %v945 = vand.u32 %v32, 4294901760
    %v946 = vsub.f32 %v32, %v945
    %947 = vmatpush1.msra.mxu0 %v946
    %948 = vmatprep.subr.mxu0 0.0
    %v949 = vand.u32 %v31, 4294901760
    %v950 = vsub.f32 %v31, %v949
    %951 = vmatpush1.msra.mxu0 %v950
    %952 = vmatprep.subr.mxu0 0.0
    %v953 = vand.u32 %v30, 4294901760
    %v954 = vsub.f32 %v30, %v953
    %955 = vmatpush1.msra.mxu0 %v954
    %956 = vmatprep.subr.mxu0 0.0
    %v957 = vand.u32 %v29, 4294901760
    %v958 = vsub.f32 %v29, %v957
    %959 = vmatpush1.msra.mxu0 %v958
    %960 = vmatprep.subr.mxu0 0.0
    %v961 = vand.u32 %v28, 4294901760
    %v962 = vsub.f32 %v28, %v961
    %963 = vmatpush1.msra.mxu0 %v962
    %964 = vmatprep.subr.mxu0 0.0
    %v965 = vand.u32 %v27, 4294901760
    %v966 = vsub.f32 %v27, %v965
    %967 = vmatpush1.msra.mxu0 %v966
    %968 = vmatprep.subr.mxu0 0.0
    %v969 = vand.u32 %v26, 4294901760
    %v970 = vsub.f32 %v26, %v969
    %971 = vmatpush1.msra.mxu0 %v970
    %972 = vmatprep.subr.mxu0 0.0
    %v973 = vand.u32 %v25, 4294901760
    %v974 = vsub.f32 %v25, %v973
    %975 = vmatpush1.msra.mxu0 %v974
    %976 = vmatprep.subr.mxu0 0.0
    %v977 = vand.u32 %v24, 4294901760
    %v978 = vsub.f32 %v24, %v977
    %979 = vmatpush1.msra.mxu0 %v978
    %980 = vmatprep.subr.mxu0 0.0
    %v981 = vand.u32 %v23, 4294901760
    %v982 = vsub.f32 %v23, %v981
    %983 = vmatpush1.msra.mxu0 %v982
    %984 = vmatprep.subr.mxu0 0.0
    %v985 = vand.u32 %v22, 4294901760
    %v986 = vsub.f32 %v22, %v985
    %987 = vmatpush1.msra.mxu0 %v986
    %988 = vmatprep.subr.mxu0 0.0
    %989 = vmatpush2.msra.mxu0 0.0
    %990 = vmatprep.subr.mxu0 0.0
    %991 = vmatpush2.msra.mxu0 0.0
    %992 = vmatprep.subr.mxu0 0.0
    %993 = vmatpush2.msra.mxu0 0.0
    %994 = vmatprep.subr.mxu0 0.0
    %995 = vmatpush2.msra.mxu0 0.0
    %996 = vmatprep.subr.mxu0 0.0
    %997 = vmatpush2.msra.mxu0 0.0
    %998 = vmatprep.subr.mxu0 0.0
    %999 = vmatpush2.msra.mxu0 0.0
    %1000 = vmatprep.subr.mxu0 0.0
    %1001 = vmatpush2.msra.mxu0 0.0
    %1002 = vmatprep.subr.mxu0 0.0
    %1003 = vmatpush2.msra.mxu0 0.0
    %1004 = vmatprep.subr.mxu0 0.0
    %1005 = vmatpush2.msra.mxu0 0.0
    %1006 = vmatprep.subr.mxu0 0.0
    %1007 = vmatpush2.msra.mxu0 0.0
    %1008 = vmatprep.subr.mxu0 0.0
    %1009 = vmatpush2.msra.mxu0 0.0
    %1010 = vmatprep.subr.mxu0 0.0
    %1011 = vmatpush2.msra.mxu0 0.0
    %1012 = vmatprep.subr.mxu0 0.0
    %1013 = vmatpush2.msra.mxu0 0.0
    %1014 = vmatprep.subr.mxu0 0.0
    %1015 = vmatpush2.msra.mxu0 0.0
    %1016 = vmatprep.subr.mxu0 0.0
    %1017 = vmatpush2.msra.mxu0 0.0
    %1018 = vmatprep.subr.mxu0 0.0
    %1019 = vmatpush2.msra.mxu0 0.0
    %1020 = vmatprep.mubr.f32.mxu0 0.0
    %v1021 = vand.u32 %v681, 4294901760
    %v1022 = vsub.f32 %v681, %v1021
    %1023 = vmatmul.mubr.f32.gmra.mxu0 %v1022
    %v1024 = vpop.f32.mrf.mxu0
    %v1025 = vadd.f32 %v921, %v1024
    %v1026 = vpop.f32.mrf.mxu0
    %1027 = vdwg.mxu0
    %1028 = vmatprep.subr.mxu0 0.0
    %v1029 = vand.u32 %v37, 4294901760
    %1030 = vmatpush1.msra.mxu0 %v1029
    %1031 = vmatprep.subr.mxu0 0.0
    %v1032 = vand.u32 %v36, 4294901760
    %1033 = vmatpush1.msra.mxu0 %v1032
    %1034 = vmatprep.subr.mxu0 0.0
    %v1035 = vand.u32 %v35, 4294901760
    %1036 = vmatpush1.msra.mxu0 %v1035
    %1037 = vmatprep.subr.mxu0 0.0
    %v1038 = vand.u32 %v34, 4294901760
    %1039 = vmatpush1.msra.mxu0 %v1038
    %1040 = vmatprep.subr.mxu0 0.0
    %v1041 = vand.u32 %v33, 4294901760
    %1042 = vmatpush1.msra.mxu0 %v1041
    %1043 = vmatprep.subr.mxu0 0.0
    %v1044 = vand.u32 %v32, 4294901760
    %1045 = vmatpush1.msra.mxu0 %v1044
    %1046 = vmatprep.subr.mxu0 0.0
    %v1047 = vand.u32 %v31, 4294901760
    %1048 = vmatpush1.msra.mxu0 %v1047
    %1049 = vmatprep.subr.mxu0 0.0
    %v1050 = vand.u32 %v30, 4294901760
    %1051 = vmatpush1.msra.mxu0 %v1050
    %1052 = vmatprep.subr.mxu0 0.0
    %v1053 = vand.u32 %v29, 4294901760
    %1054 = vmatpush1.msra.mxu0 %v1053
    %1055 = vmatprep.subr.mxu0 0.0
    %v1056 = vand.u32 %v28, 4294901760
    %1057 = vmatpush1.msra.mxu0 %v1056
    %1058 = vmatprep.subr.mxu0 0.0
    %v1059 = vand.u32 %v27, 4294901760
    %1060 = vmatpush1.msra.mxu0 %v1059
    %1061 = vmatprep.subr.mxu0 0.0
    %v1062 = vand.u32 %v26, 4294901760
    %1063 = vmatpush1.msra.mxu0 %v1062
    %1064 = vmatprep.subr.mxu0 0.0
    %v1065 = vand.u32 %v25, 4294901760
    %1066 = vmatpush1.msra.mxu0 %v1065
    %1067 = vmatprep.subr.mxu0 0.0
    %v1068 = vand.u32 %v24, 4294901760
    %1069 = vmatpush1.msra.mxu0 %v1068
    %1070 = vmatprep.subr.mxu0 0.0
    %v1071 = vand.u32 %v23, 4294901760
    %1072 = vmatpush1.msra.mxu0 %v1071
    %1073 = vmatprep.subr.mxu0 0.0
    %v1074 = vand.u32 %v22, 4294901760
    %1075 = vmatpush1.msra.mxu0 %v1074
    %1076 = vmatprep.subr.mxu0 0.0
    %1077 = vmatpush2.msra.mxu0 0.0
    %1078 = vmatprep.subr.mxu0 0.0
    %1079 = vmatpush2.msra.mxu0 0.0
    %1080 = vmatprep.subr.mxu0 0.0
    %1081 = vmatpush2.msra.mxu0 0.0
    %1082 = vmatprep.subr.mxu0 0.0
    %1083 = vmatpush2.msra.mxu0 0.0
    %1084 = vmatprep.subr.mxu0 0.0
    %1085 = vmatpush2.msra.mxu0 0.0
    %1086 = vmatprep.subr.mxu0 0.0
    %1087 = vmatpush2.msra.mxu0 0.0
    %1088 = vmatprep.subr.mxu0 0.0
    %1089 = vmatpush2.msra.mxu0 0.0
    %1090 = vmatprep.subr.mxu0 0.0
    %1091 = vmatpush2.msra.mxu0 0.0
    %1092 = vmatprep.subr.mxu0 0.0
    %1093 = vmatpush2.msra.mxu0 0.0
    %1094 = vmatprep.subr.mxu0 0.0
    %1095 = vmatpush2.msra.mxu0 0.0
    %1096 = vmatprep.subr.mxu0 0.0
    %1097 = vmatpush2.msra.mxu0 0.0
    %1098 = vmatprep.subr.mxu0 0.0
    %1099 = vmatpush2.msra.mxu0 0.0
    %1100 = vmatprep.subr.mxu0 0.0
    %1101 = vmatpush2.msra.mxu0 0.0
    %1102 = vmatprep.subr.mxu0 0.0
    %1103 = vmatpush2.msra.mxu0 0.0
    %1104 = vmatprep.subr.mxu0 0.0
    %1105 = vmatpush2.msra.mxu0 0.0
    %1106 = vmatprep.subr.mxu0 0.0
    %1107 = vmatpush2.msra.mxu0 0.0
    %1108 = vmatprep.mubr.f32.mxu0 0.0
    %v1109 = vand.u32 %v681, 4294901760
    %v1110 = vsub.f32 %v681, %v1109
    %v1111 = vand.u32 %v1110, 4294901760
    %1112 = vmatmul.mubr.f32.gmra.mxu0 %v1111
    %v1113 = vpop.f32.mrf.mxu0
    %v1114 = vadd.f32 %v1025, %v1113
    %v1115 = vpop.f32.mrf.mxu0
    %1116 = vdwg.mxu0
    %1117 = vmatprep.subr.mxu0 0.0
    %v1118 = vand.u32 %v37, 4294901760
    %v1119 = vsub.f32 %v37, %v1118
    %v1120 = vand.u32 %v1119, 4294901760
    %1121 = vmatpush1.msra.mxu0 %v1120
    %1122 = vmatprep.subr.mxu0 0.0
    %v1123 = vand.u32 %v36, 4294901760
    %v1124 = vsub.f32 %v36, %v1123
    %v1125 = vand.u32 %v1124, 4294901760
    %1126 = vmatpush1.msra.mxu0 %v1125
    %1127 = vmatprep.subr.mxu0 0.0
    %v1128 = vand.u32 %v35, 4294901760
    %v1129 = vsub.f32 %v35, %v1128
    %v1130 = vand.u32 %v1129, 4294901760
    %1131 = vmatpush1.msra.mxu0 %v1130
    %1132 = vmatprep.subr.mxu0 0.0
    %v1133 = vand.u32 %v34, 4294901760
    %v1134 = vsub.f32 %v34, %v1133
    %v1135 = vand.u32 %v1134, 4294901760
    %1136 = vmatpush1.msra.mxu0 %v1135
    %1137 = vmatprep.subr.mxu0 0.0
    %v1138 = vand.u32 %v33, 4294901760
    %v1139 = vsub.f32 %v33, %v1138
    %v1140 = vand.u32 %v1139, 4294901760
    %1141 = vmatpush1.msra.mxu0 %v1140
    %1142 = vmatprep.subr.mxu0 0.0
    %v1143 = vand.u32 %v32, 4294901760
    %v1144 = vsub.f32 %v32, %v1143
    %v1145 = vand.u32 %v1144, 4294901760
    %1146 = vmatpush1.msra.mxu0 %v1145
    %1147 = vmatprep.subr.mxu0 0.0
    %v1148 = vand.u32 %v31, 4294901760
    %v1149 = vsub.f32 %v31, %v1148
    %v1150 = vand.u32 %v1149, 4294901760
    %1151 = vmatpush1.msra.mxu0 %v1150
    %1152 = vmatprep.subr.mxu0 0.0
    %v1153 = vand.u32 %v30, 4294901760
    %v1154 = vsub.f32 %v30, %v1153
    %v1155 = vand.u32 %v1154, 4294901760
    %1156 = vmatpush1.msra.mxu0 %v1155
    %1157 = vmatprep.subr.mxu0 0.0
    %v1158 = vand.u32 %v29, 4294901760
    %v1159 = vsub.f32 %v29, %v1158
    %v1160 = vand.u32 %v1159, 4294901760
    %1161 = vmatpush1.msra.mxu0 %v1160
    %1162 = vmatprep.subr.mxu0 0.0
    %v1163 = vand.u32 %v28, 4294901760
    %v1164 = vsub.f32 %v28, %v1163
    %v1165 = vand.u32 %v1164, 4294901760
    %1166 = vmatpush1.msra.mxu0 %v1165
    %1167 = vmatprep.subr.mxu0 0.0
    %v1168 = vand.u32 %v27, 4294901760
    %v1169 = vsub.f32 %v27, %v1168
    %v1170 = vand.u32 %v1169, 4294901760
    %1171 = vmatpush1.msra.mxu0 %v1170
    %1172 = vmatprep.subr.mxu0 0.0
    %v1173 = vand.u32 %v26, 4294901760
    %v1174 = vsub.f32 %v26, %v1173
    %v1175 = vand.u32 %v1174, 4294901760
    %1176 = vmatpush1.msra.mxu0 %v1175
    %1177 = vmatprep.subr.mxu0 0.0
    %v1178 = vand.u32 %v25, 4294901760
    %v1179 = vsub.f32 %v25, %v1178
    %v1180 = vand.u32 %v1179, 4294901760
    %1181 = vmatpush1.msra.mxu0 %v1180
    %1182 = vmatprep.subr.mxu0 0.0
    %v1183 = vand.u32 %v24, 4294901760
    %v1184 = vsub.f32 %v24, %v1183
    %v1185 = vand.u32 %v1184, 4294901760
    %1186 = vmatpush1.msra.mxu0 %v1185
    %1187 = vmatprep.subr.mxu0 0.0
    %v1188 = vand.u32 %v23, 4294901760
    %v1189 = vsub.f32 %v23, %v1188
    %v1190 = vand.u32 %v1189, 4294901760
    %1191 = vmatpush1.msra.mxu0 %v1190
    %1192 = vmatprep.subr.mxu0 0.0
    %v1193 = vand.u32 %v22, 4294901760
    %v1194 = vsub.f32 %v22, %v1193
    %v1195 = vand.u32 %v1194, 4294901760
    %1196 = vmatpush1.msra.mxu0 %v1195
    %1197 = vmatprep.subr.mxu0 0.0
    %1198 = vmatpush2.msra.mxu0 0.0
    %1199 = vmatprep.subr.mxu0 0.0
    %1200 = vmatpush2.msra.mxu0 0.0
    %1201 = vmatprep.subr.mxu0 0.0
    %1202 = vmatpush2.msra.mxu0 0.0
    %1203 = vmatprep.subr.mxu0 0.0
    %1204 = vmatpush2.msra.mxu0 0.0
    %1205 = vmatprep.subr.mxu0 0.0
    %1206 = vmatpush2.msra.mxu0 0.0
    %1207 = vmatprep.subr.mxu0 0.0
    %1208 = vmatpush2.msra.mxu0 0.0
    %1209 = vmatprep.subr.mxu0 0.0
    %1210 = vmatpush2.msra.mxu0 0.0
    %1211 = vmatprep.subr.mxu0 0.0
    %1212 = vmatpush2.msra.mxu0 0.0
    %1213 = vmatprep.subr.mxu0 0.0
    %1214 = vmatpush2.msra.mxu0 0.0
    %1215 = vmatprep.subr.mxu0 0.0
    %1216 = vmatpush2.msra.mxu0 0.0
    %1217 = vmatprep.subr.mxu0 0.0
    %1218 = vmatpush2.msra.mxu0 0.0
    %1219 = vmatprep.subr.mxu0 0.0
    %1220 = vmatpush2.msra.mxu0 0.0
    %1221 = vmatprep.subr.mxu0 0.0
    %1222 = vmatpush2.msra.mxu0 0.0
    %1223 = vmatprep.subr.mxu0 0.0
    %1224 = vmatpush2.msra.mxu0 0.0
    %1225 = vmatprep.subr.mxu0 0.0
    %1226 = vmatpush2.msra.mxu0 0.0
    %1227 = vmatprep.subr.mxu0 0.0
    %1228 = vmatpush2.msra.mxu0 0.0
    %1229 = vmatprep.mubr.f32.mxu0 0.0
    %v1230 = vand.u32 %v681, 4294901760
    %1231 = vmatmul.mubr.f32.gmra.mxu0 %v1230
    %v1232 = vpop.f32.mrf.mxu0
    %v1233 = vadd.f32 %v1114, %v1232
    %v1234 = vpop.f32.mrf.mxu0
    %1235 = vdwg.mxu0
    %1236 = vmatprep.subr.mxu0 0.0
    %v1237 = vand.u32 %v37, 4294901760
    %1238 = vmatpush1.msra.mxu0 %v1237
    %1239 = vmatprep.subr.mxu0 0.0
    %v1240 = vand.u32 %v36, 4294901760
    %1241 = vmatpush1.msra.mxu0 %v1240
    %1242 = vmatprep.subr.mxu0 0.0
    %v1243 = vand.u32 %v35, 4294901760
    %1244 = vmatpush1.msra.mxu0 %v1243
    %1245 = vmatprep.subr.mxu0 0.0
    %v1246 = vand.u32 %v34, 4294901760
    %1247 = vmatpush1.msra.mxu0 %v1246
    %1248 = vmatprep.subr.mxu0 0.0
    %v1249 = vand.u32 %v33, 4294901760
    %1250 = vmatpush1.msra.mxu0 %v1249
    %1251 = vmatprep.subr.mxu0 0.0
    %v1252 = vand.u32 %v32, 4294901760
    %1253 = vmatpush1.msra.mxu0 %v1252
    %1254 = vmatprep.subr.mxu0 0.0
    %v1255 = vand.u32 %v31, 4294901760
    %1256 = vmatpush1.msra.mxu0 %v1255
    %1257 = vmatprep.subr.mxu0 0.0
    %v1258 = vand.u32 %v30, 4294901760
    %1259 = vmatpush1.msra.mxu0 %v1258
    %1260 = vmatprep.subr.mxu0 0.0
    %v1261 = vand.u32 %v29, 4294901760
    %1262 = vmatpush1.msra.mxu0 %v1261
    %1263 = vmatprep.subr.mxu0 0.0
    %v1264 = vand.u32 %v28, 4294901760
    %1265 = vmatpush1.msra.mxu0 %v1264
    %1266 = vmatprep.subr.mxu0 0.0
    %v1267 = vand.u32 %v27, 4294901760
    %1268 = vmatpush1.msra.mxu0 %v1267
    %1269 = vmatprep.subr.mxu0 0.0
    %v1270 = vand.u32 %v26, 4294901760
    %1271 = vmatpush1.msra.mxu0 %v1270
    %1272 = vmatprep.subr.mxu0 0.0
    %v1273 = vand.u32 %v25, 4294901760
    %1274 = vmatpush1.msra.mxu0 %v1273
    %1275 = vmatprep.subr.mxu0 0.0
    %v1276 = vand.u32 %v24, 4294901760
    %1277 = vmatpush1.msra.mxu0 %v1276
    %1278 = vmatprep.subr.mxu0 0.0
    %v1279 = vand.u32 %v23, 4294901760
    %1280 = vmatpush1.msra.mxu0 %v1279
    %1281 = vmatprep.subr.mxu0 0.0
    %v1282 = vand.u32 %v22, 4294901760
    %1283 = vmatpush1.msra.mxu0 %v1282
    %1284 = vmatprep.subr.mxu0 0.0
    %1285 = vmatpush2.msra.mxu0 0.0
    %1286 = vmatprep.subr.mxu0 0.0
    %1287 = vmatpush2.msra.mxu0 0.0
    %1288 = vmatprep.subr.mxu0 0.0
    %1289 = vmatpush2.msra.mxu0 0.0
    %1290 = vmatprep.subr.mxu0 0.0
    %1291 = vmatpush2.msra.mxu0 0.0
    %1292 = vmatprep.subr.mxu0 0.0
    %1293 = vmatpush2.msra.mxu0 0.0
    %1294 = vmatprep.subr.mxu0 0.0
    %1295 = vmatpush2.msra.mxu0 0.0
    %1296 = vmatprep.subr.mxu0 0.0
    %1297 = vmatpush2.msra.mxu0 0.0
    %1298 = vmatprep.subr.mxu0 0.0
    %1299 = vmatpush2.msra.mxu0 0.0
    %1300 = vmatprep.subr.mxu0 0.0
    %1301 = vmatpush2.msra.mxu0 0.0
    %1302 = vmatprep.subr.mxu0 0.0
    %1303 = vmatpush2.msra.mxu0 0.0
    %1304 = vmatprep.subr.mxu0 0.0
    %1305 = vmatpush2.msra.mxu0 0.0
    %1306 = vmatprep.subr.mxu0 0.0
    %1307 = vmatpush2.msra.mxu0 0.0
    %1308 = vmatprep.subr.mxu0 0.0
    %1309 = vmatpush2.msra.mxu0 0.0
    %1310 = vmatprep.subr.mxu0 0.0
    %1311 = vmatpush2.msra.mxu0 0.0
    %1312 = vmatprep.subr.mxu0 0.0
    %1313 = vmatpush2.msra.mxu0 0.0
    %1314 = vmatprep.subr.mxu0 0.0
    %1315 = vmatpush2.msra.mxu0 0.0
    %1316 = vmatprep.mubr.f32.mxu0 0.0
    %v1317 = vand.u32 %v681, 4294901760
    %1318 = vmatmul.mubr.f32.gmra.mxu0 %v1317
    %v1319 = vpop.f32.mrf.mxu0
    %v1320 = vadd.f32 %v1233, %v1319
    %v1321 = vpop.f32.mrf.mxu0
    %1322 = vdwg.mxu0
    %v1323 = vmul.f32 %v1320, 0.03125
    %v1324 = vmul.f32 %v680, %v680
    %v1325 = vsub.f32 %v1323, %v1324
    %v1326 = vmax.f32 %v1325, 0.0
    %v1327 = vadd.f32 %v1326, 1e-05
    %v1328 = vrsqrt.pop %v1327
    %vm1329 = vcmask 31744
    %v1331 = vsel %vm1329, %v680, 0
    %vm1333 = vcmask 1043456
    %v1335 = vsel %vm1333, %v38, 0
    %1337 = vmatprep.subr.mxu0 0.0
    %1338 = vmatpush1.msra.mxu0 0.0
    %1339 = vmatprep.subr.mxu0 0.0
    %1340 = vmatpush1.msra.mxu0 0.0
    %1341 = vmatprep.subr.mxu0 0.0
    %1342 = vmatpush1.msra.mxu0 0.0
    %1343 = vmatprep.subr.mxu0 0.0
    %1344 = vmatpush1.msra.mxu0 0.0
    %1345 = vmatprep.subr.mxu0 0.0
    %1346 = vmatpush1.msra.mxu0 0.0
    %1347 = vmatprep.subr.mxu0 0.0
    %1348 = vmatpush1.msra.mxu0 0.0
    %1349 = vmatprep.subr.mxu0 0.0
    %1350 = vmatpush1.msra.mxu0 0.0
    %1351 = vmatprep.subr.mxu0 0.0
    %1352 = vmatpush1.msra.mxu0 0.0
    %1353 = vmatprep.subr.mxu0 0.0
    %1354 = vmatpush1.msra.mxu0 0.0
    %1355 = vmatprep.subr.mxu0 0.0
    %1356 = vmatpush1.msra.mxu0 0.0
    %1357 = vmatprep.subr.mxu0 0.0
    %1358 = vmatpush1.msra.mxu0 0.0
    %1359 = vmatprep.subr.mxu0 0.0
    %1360 = vmatpush1.msra.mxu0 0.0
    %1361 = vmatprep.subr.mxu0 0.0
    %1362 = vmatpush1.msra.mxu0 0.0
    %1363 = vmatprep.subr.mxu0 0.0
    %1364 = vmatpush1.msra.mxu0 0.0
    %1365 = vmatprep.subr.mxu0 0.0
    %1366 = vmatpush1.msra.mxu0 0.0
    %1367 = vmatprep.subr.mxu0 0.0
    %v1368 = vand.u32 %v1335, 4294901760
    %1369 = vmatpush1.msra.mxu0 %v1368
    %1370 = vmatprep.subr.mxu0 0.0
    %1371 = vmatpush2.msra.mxu0 0.0
    %1372 = vmatprep.subr.mxu0 0.0
    %1373 = vmatpush2.msra.mxu0 0.0
    %1374 = vmatprep.subr.mxu0 0.0
    %1375 = vmatpush2.msra.mxu0 0.0
    %1376 = vmatprep.subr.mxu0 0.0
    %1377 = vmatpush2.msra.mxu0 0.0
    %1378 = vmatprep.subr.mxu0 0.0
    %1379 = vmatpush2.msra.mxu0 0.0
    %1380 = vmatprep.subr.mxu0 0.0
    %1381 = vmatpush2.msra.mxu0 0.0
    %1382 = vmatprep.subr.mxu0 0.0
    %1383 = vmatpush2.msra.mxu0 0.0
    %1384 = vmatprep.subr.mxu0 0.0
    %1385 = vmatpush2.msra.mxu0 0.0
    %1386 = vmatprep.subr.mxu0 0.0
    %1387 = vmatpush2.msra.mxu0 0.0
    %1388 = vmatprep.subr.mxu0 0.0
    %1389 = vmatpush2.msra.mxu0 0.0
    %1390 = vmatprep.subr.mxu0 0.0
    %1391 = vmatpush2.msra.mxu0 0.0
    %1392 = vmatprep.subr.mxu0 0.0
    %1393 = vmatpush2.msra.mxu0 0.0
    %1394 = vmatprep.subr.mxu0 0.0
    %1395 = vmatpush2.msra.mxu0 0.0
    %1396 = vmatprep.subr.mxu0 0.0
    %1397 = vmatpush2.msra.mxu0 0.0
    %1398 = vmatprep.subr.mxu0 0.0
    %1399 = vmatpush2.msra.mxu0 0.0
    %1400 = vmatprep.subr.mxu0 0.0
    %1401 = vmatpush2.msra.mxu0 0.0
    %1402 = vmatprep.mubr.f32.mxu0 0.0
    %v1403 = vand.u32 %v1331, 4294901760
    %v1404 = vsub.f32 %v1331, %v1403
    %v1405 = vand.u32 %v1404, 4294901760
    %v1406 = vsub.f32 %v1404, %v1405
    %v1407 = vand.u32 %v1406, 4294901760
    %1408 = vmatmul.mubr.f32.gmra.mxu0 %v1407
    %v1409 = vpop.f32.mrf.mxu0
    %v1410 = vadd.f32 0.0, %v1409
    %v1411 = vpop.f32.mrf.mxu0
    %1412 = vdwg.mxu0
    %1413 = vmatprep.subr.mxu0 0.0
    %1414 = vmatpush1.msra.mxu0 0.0
    %1415 = vmatprep.subr.mxu0 0.0
    %1416 = vmatpush1.msra.mxu0 0.0
    %1417 = vmatprep.subr.mxu0 0.0
    %1418 = vmatpush1.msra.mxu0 0.0
    %1419 = vmatprep.subr.mxu0 0.0
    %1420 = vmatpush1.msra.mxu0 0.0
    %1421 = vmatprep.subr.mxu0 0.0
    %1422 = vmatpush1.msra.mxu0 0.0
    %1423 = vmatprep.subr.mxu0 0.0
    %1424 = vmatpush1.msra.mxu0 0.0
    %1425 = vmatprep.subr.mxu0 0.0
    %1426 = vmatpush1.msra.mxu0 0.0
    %1427 = vmatprep.subr.mxu0 0.0
    %1428 = vmatpush1.msra.mxu0 0.0
    %1429 = vmatprep.subr.mxu0 0.0
    %1430 = vmatpush1.msra.mxu0 0.0
    %1431 = vmatprep.subr.mxu0 0.0
    %1432 = vmatpush1.msra.mxu0 0.0
    %1433 = vmatprep.subr.mxu0 0.0
    %1434 = vmatpush1.msra.mxu0 0.0
    %1435 = vmatprep.subr.mxu0 0.0
    %1436 = vmatpush1.msra.mxu0 0.0
    %1437 = vmatprep.subr.mxu0 0.0
    %1438 = vmatpush1.msra.mxu0 0.0
    %1439 = vmatprep.subr.mxu0 0.0
    %1440 = vmatpush1.msra.mxu0 0.0
    %1441 = vmatprep.subr.mxu0 0.0
    %1442 = vmatpush1.msra.mxu0 0.0
    %1443 = vmatprep.subr.mxu0 0.0
    %v1444 = vand.u32 %v1335, 4294901760
    %v1445 = vsub.f32 %v1335, %v1444
    %v1446 = vand.u32 %v1445, 4294901760
    %v1447 = vsub.f32 %v1445, %v1446
    %v1448 = vand.u32 %v1447, 4294901760
    %1449 = vmatpush1.msra.mxu0 %v1448
    %1450 = vmatprep.subr.mxu0 0.0
    %1451 = vmatpush2.msra.mxu0 0.0
    %1452 = vmatprep.subr.mxu0 0.0
    %1453 = vmatpush2.msra.mxu0 0.0
    %1454 = vmatprep.subr.mxu0 0.0
    %1455 = vmatpush2.msra.mxu0 0.0
    %1456 = vmatprep.subr.mxu0 0.0
    %1457 = vmatpush2.msra.mxu0 0.0
    %1458 = vmatprep.subr.mxu0 0.0
    %1459 = vmatpush2.msra.mxu0 0.0
    %1460 = vmatprep.subr.mxu0 0.0
    %1461 = vmatpush2.msra.mxu0 0.0
    %1462 = vmatprep.subr.mxu0 0.0
    %1463 = vmatpush2.msra.mxu0 0.0
    %1464 = vmatprep.subr.mxu0 0.0
    %1465 = vmatpush2.msra.mxu0 0.0
    %1466 = vmatprep.subr.mxu0 0.0
    %1467 = vmatpush2.msra.mxu0 0.0
    %1468 = vmatprep.subr.mxu0 0.0
    %1469 = vmatpush2.msra.mxu0 0.0
    %1470 = vmatprep.subr.mxu0 0.0
    %1471 = vmatpush2.msra.mxu0 0.0
    %1472 = vmatprep.subr.mxu0 0.0
    %1473 = vmatpush2.msra.mxu0 0.0
    %1474 = vmatprep.subr.mxu0 0.0
    %1475 = vmatpush2.msra.mxu0 0.0
    %1476 = vmatprep.subr.mxu0 0.0
    %1477 = vmatpush2.msra.mxu0 0.0
    %1478 = vmatprep.subr.mxu0 0.0
    %1479 = vmatpush2.msra.mxu0 0.0
    %1480 = vmatprep.subr.mxu0 0.0
    %1481 = vmatpush2.msra.mxu0 0.0
    %1482 = vmatprep.mubr.f32.mxu0 0.0
    %v1483 = vand.u32 %v1331, 4294901760
    %1484 = vmatmul.mubr.f32.gmra.mxu0 %v1483
    %v1485 = vpop.f32.mrf.mxu0
    %v1486 = vadd.f32 %v1410, %v1485
    %v1487 = vpop.f32.mrf.mxu0
    %1488 = vdwg.mxu0
    %1489 = vmatprep.subr.mxu0 0.0
    %1490 = vmatpush1.msra.mxu0 0.0
    %1491 = vmatprep.subr.mxu0 0.0
    %1492 = vmatpush1.msra.mxu0 0.0
    %1493 = vmatprep.subr.mxu0 0.0
    %1494 = vmatpush1.msra.mxu0 0.0
    %1495 = vmatprep.subr.mxu0 0.0
    %1496 = vmatpush1.msra.mxu0 0.0
    %1497 = vmatprep.subr.mxu0 0.0
    %1498 = vmatpush1.msra.mxu0 0.0
    %1499 = vmatprep.subr.mxu0 0.0
    %1500 = vmatpush1.msra.mxu0 0.0
    %1501 = vmatprep.subr.mxu0 0.0
    %1502 = vmatpush1.msra.mxu0 0.0
    %1503 = vmatprep.subr.mxu0 0.0
    %1504 = vmatpush1.msra.mxu0 0.0
    %1505 = vmatprep.subr.mxu0 0.0
    %1506 = vmatpush1.msra.mxu0 0.0
    %1507 = vmatprep.subr.mxu0 0.0
    %1508 = vmatpush1.msra.mxu0 0.0
    %1509 = vmatprep.subr.mxu0 0.0
    %1510 = vmatpush1.msra.mxu0 0.0
    %1511 = vmatprep.subr.mxu0 0.0
    %1512 = vmatpush1.msra.mxu0 0.0
    %1513 = vmatprep.subr.mxu0 0.0
    %1514 = vmatpush1.msra.mxu0 0.0
    %1515 = vmatprep.subr.mxu0 0.0
    %1516 = vmatpush1.msra.mxu0 0.0
    %1517 = vmatprep.subr.mxu0 0.0
    %1518 = vmatpush1.msra.mxu0 0.0
    %1519 = vmatprep.subr.mxu0 0.0
    %v1520 = vand.u32 %v1335, 4294901760
    %v1521 = vsub.f32 %v1335, %v1520
    %1522 = vmatpush1.msra.mxu0 %v1521
    %1523 = vmatprep.subr.mxu0 0.0
    %1524 = vmatpush2.msra.mxu0 0.0
    %1525 = vmatprep.subr.mxu0 0.0
    %1526 = vmatpush2.msra.mxu0 0.0
    %1527 = vmatprep.subr.mxu0 0.0
    %1528 = vmatpush2.msra.mxu0 0.0
    %1529 = vmatprep.subr.mxu0 0.0
    %1530 = vmatpush2.msra.mxu0 0.0
    %1531 = vmatprep.subr.mxu0 0.0
    %1532 = vmatpush2.msra.mxu0 0.0
    %1533 = vmatprep.subr.mxu0 0.0
    %1534 = vmatpush2.msra.mxu0 0.0
    %1535 = vmatprep.subr.mxu0 0.0
    %1536 = vmatpush2.msra.mxu0 0.0
    %1537 = vmatprep.subr.mxu0 0.0
    %1538 = vmatpush2.msra.mxu0 0.0
    %1539 = vmatprep.subr.mxu0 0.0
    %1540 = vmatpush2.msra.mxu0 0.0
    %1541 = vmatprep.subr.mxu0 0.0
    %1542 = vmatpush2.msra.mxu0 0.0
    %1543 = vmatprep.subr.mxu0 0.0
    %1544 = vmatpush2.msra.mxu0 0.0
    %1545 = vmatprep.subr.mxu0 0.0
    %1546 = vmatpush2.msra.mxu0 0.0
    %1547 = vmatprep.subr.mxu0 0.0
    %1548 = vmatpush2.msra.mxu0 0.0
    %1549 = vmatprep.subr.mxu0 0.0
    %1550 = vmatpush2.msra.mxu0 0.0
    %1551 = vmatprep.subr.mxu0 0.0
    %1552 = vmatpush2.msra.mxu0 0.0
    %1553 = vmatprep.subr.mxu0 0.0
    %1554 = vmatpush2.msra.mxu0 0.0
    %1555 = vmatprep.mubr.f32.mxu0 0.0
    %v1556 = vand.u32 %v1331, 4294901760
    %v1557 = vsub.f32 %v1331, %v1556
    %1558 = vmatmul.mubr.f32.gmra.mxu0 %v1557
    %v1559 = vpop.f32.mrf.mxu0
    %v1560 = vadd.f32 %v1486, %v1559
    %v1561 = vpop.f32.mrf.mxu0
    %1562 = vdwg.mxu0
    %1563 = vmatprep.subr.mxu0 0.0
    %1564 = vmatpush1.msra.mxu0 0.0
    %1565 = vmatprep.subr.mxu0 0.0
    %1566 = vmatpush1.msra.mxu0 0.0
    %1567 = vmatprep.subr.mxu0 0.0
    %1568 = vmatpush1.msra.mxu0 0.0
    %1569 = vmatprep.subr.mxu0 0.0
    %1570 = vmatpush1.msra.mxu0 0.0
    %1571 = vmatprep.subr.mxu0 0.0
    %1572 = vmatpush1.msra.mxu0 0.0
    %1573 = vmatprep.subr.mxu0 0.0
    %1574 = vmatpush1.msra.mxu0 0.0
    %1575 = vmatprep.subr.mxu0 0.0
    %1576 = vmatpush1.msra.mxu0 0.0
    %1577 = vmatprep.subr.mxu0 0.0
    %1578 = vmatpush1.msra.mxu0 0.0
    %1579 = vmatprep.subr.mxu0 0.0
    %1580 = vmatpush1.msra.mxu0 0.0
    %1581 = vmatprep.subr.mxu0 0.0
    %1582 = vmatpush1.msra.mxu0 0.0
    %1583 = vmatprep.subr.mxu0 0.0
    %1584 = vmatpush1.msra.mxu0 0.0
    %1585 = vmatprep.subr.mxu0 0.0
    %1586 = vmatpush1.msra.mxu0 0.0
    %1587 = vmatprep.subr.mxu0 0.0
    %1588 = vmatpush1.msra.mxu0 0.0
    %1589 = vmatprep.subr.mxu0 0.0
    %1590 = vmatpush1.msra.mxu0 0.0
    %1591 = vmatprep.subr.mxu0 0.0
    %1592 = vmatpush1.msra.mxu0 0.0
    %1593 = vmatprep.subr.mxu0 0.0
    %v1594 = vand.u32 %v1335, 4294901760
    %1595 = vmatpush1.msra.mxu0 %v1594
    %1596 = vmatprep.subr.mxu0 0.0
    %1597 = vmatpush2.msra.mxu0 0.0
    %1598 = vmatprep.subr.mxu0 0.0
    %1599 = vmatpush2.msra.mxu0 0.0
    %1600 = vmatprep.subr.mxu0 0.0
    %1601 = vmatpush2.msra.mxu0 0.0
    %1602 = vmatprep.subr.mxu0 0.0
    %1603 = vmatpush2.msra.mxu0 0.0
    %1604 = vmatprep.subr.mxu0 0.0
    %1605 = vmatpush2.msra.mxu0 0.0
    %1606 = vmatprep.subr.mxu0 0.0
    %1607 = vmatpush2.msra.mxu0 0.0
    %1608 = vmatprep.subr.mxu0 0.0
    %1609 = vmatpush2.msra.mxu0 0.0
    %1610 = vmatprep.subr.mxu0 0.0
    %1611 = vmatpush2.msra.mxu0 0.0
    %1612 = vmatprep.subr.mxu0 0.0
    %1613 = vmatpush2.msra.mxu0 0.0
    %1614 = vmatprep.subr.mxu0 0.0
    %1615 = vmatpush2.msra.mxu0 0.0
    %1616 = vmatprep.subr.mxu0 0.0
    %1617 = vmatpush2.msra.mxu0 0.0
    %1618 = vmatprep.subr.mxu0 0.0
    %1619 = vmatpush2.msra.mxu0 0.0
    %1620 = vmatprep.subr.mxu0 0.0
    %1621 = vmatpush2.msra.mxu0 0.0
    %1622 = vmatprep.subr.mxu0 0.0
    %1623 = vmatpush2.msra.mxu0 0.0
    %1624 = vmatprep.subr.mxu0 0.0
    %1625 = vmatpush2.msra.mxu0 0.0
    %1626 = vmatprep.subr.mxu0 0.0
    %1627 = vmatpush2.msra.mxu0 0.0
    %1628 = vmatprep.mubr.f32.mxu0 0.0
    %v1629 = vand.u32 %v1331, 4294901760
    %v1630 = vsub.f32 %v1331, %v1629
    %v1631 = vand.u32 %v1630, 4294901760
    %1632 = vmatmul.mubr.f32.gmra.mxu0 %v1631
    %v1633 = vpop.f32.mrf.mxu0
    %v1634 = vadd.f32 %v1560, %v1633
    %v1635 = vpop.f32.mrf.mxu0
    %1636 = vdwg.mxu0
    %1637 = vmatprep.subr.mxu0 0.0
    %1638 = vmatpush1.msra.mxu0 0.0
    %1639 = vmatprep.subr.mxu0 0.0
    %1640 = vmatpush1.msra.mxu0 0.0
    %1641 = vmatprep.subr.mxu0 0.0
    %1642 = vmatpush1.msra.mxu0 0.0
    %1643 = vmatprep.subr.mxu0 0.0
    %1644 = vmatpush1.msra.mxu0 0.0
    %1645 = vmatprep.subr.mxu0 0.0
    %1646 = vmatpush1.msra.mxu0 0.0
    %1647 = vmatprep.subr.mxu0 0.0
    %1648 = vmatpush1.msra.mxu0 0.0
    %1649 = vmatprep.subr.mxu0 0.0
    %1650 = vmatpush1.msra.mxu0 0.0
    %1651 = vmatprep.subr.mxu0 0.0
    %1652 = vmatpush1.msra.mxu0 0.0
    %1653 = vmatprep.subr.mxu0 0.0
    %1654 = vmatpush1.msra.mxu0 0.0
    %1655 = vmatprep.subr.mxu0 0.0
    %1656 = vmatpush1.msra.mxu0 0.0
    %1657 = vmatprep.subr.mxu0 0.0
    %1658 = vmatpush1.msra.mxu0 0.0
    %1659 = vmatprep.subr.mxu0 0.0
    %1660 = vmatpush1.msra.mxu0 0.0
    %1661 = vmatprep.subr.mxu0 0.0
    %1662 = vmatpush1.msra.mxu0 0.0
    %1663 = vmatprep.subr.mxu0 0.0
    %1664 = vmatpush1.msra.mxu0 0.0
    %1665 = vmatprep.subr.mxu0 0.0
    %1666 = vmatpush1.msra.mxu0 0.0
    %1667 = vmatprep.subr.mxu0 0.0
    %v1668 = vand.u32 %v1335, 4294901760
    %v1669 = vsub.f32 %v1335, %v1668
    %v1670 = vand.u32 %v1669, 4294901760
    %1671 = vmatpush1.msra.mxu0 %v1670
    %1672 = vmatprep.subr.mxu0 0.0
    %1673 = vmatpush2.msra.mxu0 0.0
    %1674 = vmatprep.subr.mxu0 0.0
    %1675 = vmatpush2.msra.mxu0 0.0
    %1676 = vmatprep.subr.mxu0 0.0
    %1677 = vmatpush2.msra.mxu0 0.0
    %1678 = vmatprep.subr.mxu0 0.0
    %1679 = vmatpush2.msra.mxu0 0.0
    %1680 = vmatprep.subr.mxu0 0.0
    %1681 = vmatpush2.msra.mxu0 0.0
    %1682 = vmatprep.subr.mxu0 0.0
    %1683 = vmatpush2.msra.mxu0 0.0
    %1684 = vmatprep.subr.mxu0 0.0
    %1685 = vmatpush2.msra.mxu0 0.0
    %1686 = vmatprep.subr.mxu0 0.0
    %1687 = vmatpush2.msra.mxu0 0.0
    %1688 = vmatprep.subr.mxu0 0.0
    %1689 = vmatpush2.msra.mxu0 0.0
    %1690 = vmatprep.subr.mxu0 0.0
    %1691 = vmatpush2.msra.mxu0 0.0
    %1692 = vmatprep.subr.mxu0 0.0
    %1693 = vmatpush2.msra.mxu0 0.0
    %1694 = vmatprep.subr.mxu0 0.0
    %1695 = vmatpush2.msra.mxu0 0.0
    %1696 = vmatprep.subr.mxu0 0.0
    %1697 = vmatpush2.msra.mxu0 0.0
    %1698 = vmatprep.subr.mxu0 0.0
    %1699 = vmatpush2.msra.mxu0 0.0
    %1700 = vmatprep.subr.mxu0 0.0
    %1701 = vmatpush2.msra.mxu0 0.0
    %1702 = vmatprep.subr.mxu0 0.0
    %1703 = vmatpush2.msra.mxu0 0.0
    %1704 = vmatprep.mubr.f32.mxu0 0.0
    %v1705 = vand.u32 %v1331, 4294901760
    %1706 = vmatmul.mubr.f32.gmra.mxu0 %v1705
    %v1707 = vpop.f32.mrf.mxu0
    %v1708 = vadd.f32 %v1634, %v1707
    %v1709 = vpop.f32.mrf.mxu0
    %1710 = vdwg.mxu0
    %1711 = vmatprep.subr.mxu0 0.0
    %1712 = vmatpush1.msra.mxu0 0.0
    %1713 = vmatprep.subr.mxu0 0.0
    %1714 = vmatpush1.msra.mxu0 0.0
    %1715 = vmatprep.subr.mxu0 0.0
    %1716 = vmatpush1.msra.mxu0 0.0
    %1717 = vmatprep.subr.mxu0 0.0
    %1718 = vmatpush1.msra.mxu0 0.0
    %1719 = vmatprep.subr.mxu0 0.0
    %1720 = vmatpush1.msra.mxu0 0.0
    %1721 = vmatprep.subr.mxu0 0.0
    %1722 = vmatpush1.msra.mxu0 0.0
    %1723 = vmatprep.subr.mxu0 0.0
    %1724 = vmatpush1.msra.mxu0 0.0
    %1725 = vmatprep.subr.mxu0 0.0
    %1726 = vmatpush1.msra.mxu0 0.0
    %1727 = vmatprep.subr.mxu0 0.0
    %1728 = vmatpush1.msra.mxu0 0.0
    %1729 = vmatprep.subr.mxu0 0.0
    %1730 = vmatpush1.msra.mxu0 0.0
    %1731 = vmatprep.subr.mxu0 0.0
    %1732 = vmatpush1.msra.mxu0 0.0
    %1733 = vmatprep.subr.mxu0 0.0
    %1734 = vmatpush1.msra.mxu0 0.0
    %1735 = vmatprep.subr.mxu0 0.0
    %1736 = vmatpush1.msra.mxu0 0.0
    %1737 = vmatprep.subr.mxu0 0.0
    %1738 = vmatpush1.msra.mxu0 0.0
    %1739 = vmatprep.subr.mxu0 0.0
    %1740 = vmatpush1.msra.mxu0 0.0
    %1741 = vmatprep.subr.mxu0 0.0
    %v1742 = vand.u32 %v1335, 4294901760
    %1743 = vmatpush1.msra.mxu0 %v1742
    %1744 = vmatprep.subr.mxu0 0.0
    %1745 = vmatpush2.msra.mxu0 0.0
    %1746 = vmatprep.subr.mxu0 0.0
    %1747 = vmatpush2.msra.mxu0 0.0
    %1748 = vmatprep.subr.mxu0 0.0
    %1749 = vmatpush2.msra.mxu0 0.0
    %1750 = vmatprep.subr.mxu0 0.0
    %1751 = vmatpush2.msra.mxu0 0.0
    %1752 = vmatprep.subr.mxu0 0.0
    %1753 = vmatpush2.msra.mxu0 0.0
    %1754 = vmatprep.subr.mxu0 0.0
    %1755 = vmatpush2.msra.mxu0 0.0
    %1756 = vmatprep.subr.mxu0 0.0
    %1757 = vmatpush2.msra.mxu0 0.0
    %1758 = vmatprep.subr.mxu0 0.0
    %1759 = vmatpush2.msra.mxu0 0.0
    %1760 = vmatprep.subr.mxu0 0.0
    %1761 = vmatpush2.msra.mxu0 0.0
    %1762 = vmatprep.subr.mxu0 0.0
    %1763 = vmatpush2.msra.mxu0 0.0
    %1764 = vmatprep.subr.mxu0 0.0
    %1765 = vmatpush2.msra.mxu0 0.0
    %1766 = vmatprep.subr.mxu0 0.0
    %1767 = vmatpush2.msra.mxu0 0.0
    %1768 = vmatprep.subr.mxu0 0.0
    %1769 = vmatpush2.msra.mxu0 0.0
    %1770 = vmatprep.subr.mxu0 0.0
    %1771 = vmatpush2.msra.mxu0 0.0
    %1772 = vmatprep.subr.mxu0 0.0
    %1773 = vmatpush2.msra.mxu0 0.0
    %1774 = vmatprep.subr.mxu0 0.0
    %1775 = vmatpush2.msra.mxu0 0.0
    %1776 = vmatprep.mubr.f32.mxu0 0.0
    %v1777 = vand.u32 %v1331, 4294901760
    %1778 = vmatmul.mubr.f32.gmra.mxu0 %v1777
    %v1779 = vpop.f32.mrf.mxu0
    %v1780 = vadd.f32 %v1708, %v1779
    %v1781 = vpop.f32.mrf.mxu0
    %1782 = vdwg.mxu0
    %v1784 = vsel %vm1329, %v1328, 0
    %1786 = vmatprep.subr.mxu0 0.0
    %1787 = vmatpush1.msra.mxu0 0.0
    %1788 = vmatprep.subr.mxu0 0.0
    %1789 = vmatpush1.msra.mxu0 0.0
    %1790 = vmatprep.subr.mxu0 0.0
    %1791 = vmatpush1.msra.mxu0 0.0
    %1792 = vmatprep.subr.mxu0 0.0
    %1793 = vmatpush1.msra.mxu0 0.0
    %1794 = vmatprep.subr.mxu0 0.0
    %1795 = vmatpush1.msra.mxu0 0.0
    %1796 = vmatprep.subr.mxu0 0.0
    %1797 = vmatpush1.msra.mxu0 0.0
    %1798 = vmatprep.subr.mxu0 0.0
    %1799 = vmatpush1.msra.mxu0 0.0
    %1800 = vmatprep.subr.mxu0 0.0
    %1801 = vmatpush1.msra.mxu0 0.0
    %1802 = vmatprep.subr.mxu0 0.0
    %1803 = vmatpush1.msra.mxu0 0.0
    %1804 = vmatprep.subr.mxu0 0.0
    %1805 = vmatpush1.msra.mxu0 0.0
    %1806 = vmatprep.subr.mxu0 0.0
    %1807 = vmatpush1.msra.mxu0 0.0
    %1808 = vmatprep.subr.mxu0 0.0
    %1809 = vmatpush1.msra.mxu0 0.0
    %1810 = vmatprep.subr.mxu0 0.0
    %1811 = vmatpush1.msra.mxu0 0.0
    %1812 = vmatprep.subr.mxu0 0.0
    %1813 = vmatpush1.msra.mxu0 0.0
    %1814 = vmatprep.subr.mxu0 0.0
    %1815 = vmatpush1.msra.mxu0 0.0
    %1816 = vmatprep.subr.mxu0 0.0
    %v1817 = vand.u32 %v1335, 4294901760
    %1818 = vmatpush1.msra.mxu0 %v1817
    %1819 = vmatprep.subr.mxu0 0.0
    %1820 = vmatpush2.msra.mxu0 0.0
    %1821 = vmatprep.subr.mxu0 0.0
    %1822 = vmatpush2.msra.mxu0 0.0
    %1823 = vmatprep.subr.mxu0 0.0
    %1824 = vmatpush2.msra.mxu0 0.0
    %1825 = vmatprep.subr.mxu0 0.0
    %1826 = vmatpush2.msra.mxu0 0.0
    %1827 = vmatprep.subr.mxu0 0.0
    %1828 = vmatpush2.msra.mxu0 0.0
    %1829 = vmatprep.subr.mxu0 0.0
    %1830 = vmatpush2.msra.mxu0 0.0
    %1831 = vmatprep.subr.mxu0 0.0
    %1832 = vmatpush2.msra.mxu0 0.0
    %1833 = vmatprep.subr.mxu0 0.0
    %1834 = vmatpush2.msra.mxu0 0.0
    %1835 = vmatprep.subr.mxu0 0.0
    %1836 = vmatpush2.msra.mxu0 0.0
    %1837 = vmatprep.subr.mxu0 0.0
    %1838 = vmatpush2.msra.mxu0 0.0
    %1839 = vmatprep.subr.mxu0 0.0
    %1840 = vmatpush2.msra.mxu0 0.0
    %1841 = vmatprep.subr.mxu0 0.0
    %1842 = vmatpush2.msra.mxu0 0.0
    %1843 = vmatprep.subr.mxu0 0.0
    %1844 = vmatpush2.msra.mxu0 0.0
    %1845 = vmatprep.subr.mxu0 0.0
    %1846 = vmatpush2.msra.mxu0 0.0
    %1847 = vmatprep.subr.mxu0 0.0
    %1848 = vmatpush2.msra.mxu0 0.0
    %1849 = vmatprep.subr.mxu0 0.0
    %1850 = vmatpush2.msra.mxu0 0.0
    %1851 = vmatprep.mubr.f32.mxu0 0.0
    %v1852 = vand.u32 %v1784, 4294901760
    %v1853 = vsub.f32 %v1784, %v1852
    %v1854 = vand.u32 %v1853, 4294901760
    %v1855 = vsub.f32 %v1853, %v1854
    %v1856 = vand.u32 %v1855, 4294901760
    %1857 = vmatmul.mubr.f32.gmra.mxu0 %v1856
    %v1858 = vpop.f32.mrf.mxu0
    %v1859 = vadd.f32 0.0, %v1858
    %v1860 = vpop.f32.mrf.mxu0
    %1861 = vdwg.mxu0
    %1862 = vmatprep.subr.mxu0 0.0
    %1863 = vmatpush1.msra.mxu0 0.0
    %1864 = vmatprep.subr.mxu0 0.0
    %1865 = vmatpush1.msra.mxu0 0.0
    %1866 = vmatprep.subr.mxu0 0.0
    %1867 = vmatpush1.msra.mxu0 0.0
    %1868 = vmatprep.subr.mxu0 0.0
    %1869 = vmatpush1.msra.mxu0 0.0
    %1870 = vmatprep.subr.mxu0 0.0
    %1871 = vmatpush1.msra.mxu0 0.0
    %1872 = vmatprep.subr.mxu0 0.0
    %1873 = vmatpush1.msra.mxu0 0.0
    %1874 = vmatprep.subr.mxu0 0.0
    %1875 = vmatpush1.msra.mxu0 0.0
    %1876 = vmatprep.subr.mxu0 0.0
    %1877 = vmatpush1.msra.mxu0 0.0
    %1878 = vmatprep.subr.mxu0 0.0
    %1879 = vmatpush1.msra.mxu0 0.0
    %1880 = vmatprep.subr.mxu0 0.0
    %1881 = vmatpush1.msra.mxu0 0.0
    %1882 = vmatprep.subr.mxu0 0.0
    %1883 = vmatpush1.msra.mxu0 0.0
    %1884 = vmatprep.subr.mxu0 0.0
    %1885 = vmatpush1.msra.mxu0 0.0
    %1886 = vmatprep.subr.mxu0 0.0
    %1887 = vmatpush1.msra.mxu0 0.0
    %1888 = vmatprep.subr.mxu0 0.0
    %1889 = vmatpush1.msra.mxu0 0.0
    %1890 = vmatprep.subr.mxu0 0.0
    %1891 = vmatpush1.msra.mxu0 0.0
    %1892 = vmatprep.subr.mxu0 0.0
    %v1893 = vand.u32 %v1335, 4294901760
    %v1894 = vsub.f32 %v1335, %v1893
    %v1895 = vand.u32 %v1894, 4294901760
    %v1896 = vsub.f32 %v1894, %v1895
    %v1897 = vand.u32 %v1896, 4294901760
    %1898 = vmatpush1.msra.mxu0 %v1897
    %1899 = vmatprep.subr.mxu0 0.0
    %1900 = vmatpush2.msra.mxu0 0.0
    %1901 = vmatprep.subr.mxu0 0.0
    %1902 = vmatpush2.msra.mxu0 0.0
    %1903 = vmatprep.subr.mxu0 0.0
    %1904 = vmatpush2.msra.mxu0 0.0
    %1905 = vmatprep.subr.mxu0 0.0
    %1906 = vmatpush2.msra.mxu0 0.0
    %1907 = vmatprep.subr.mxu0 0.0
    %1908 = vmatpush2.msra.mxu0 0.0
    %1909 = vmatprep.subr.mxu0 0.0
    %1910 = vmatpush2.msra.mxu0 0.0
    %1911 = vmatprep.subr.mxu0 0.0
    %1912 = vmatpush2.msra.mxu0 0.0
    %1913 = vmatprep.subr.mxu0 0.0
    %1914 = vmatpush2.msra.mxu0 0.0
    %1915 = vmatprep.subr.mxu0 0.0
    %1916 = vmatpush2.msra.mxu0 0.0
    %1917 = vmatprep.subr.mxu0 0.0
    %1918 = vmatpush2.msra.mxu0 0.0
    %1919 = vmatprep.subr.mxu0 0.0
    %1920 = vmatpush2.msra.mxu0 0.0
    %1921 = vmatprep.subr.mxu0 0.0
    %1922 = vmatpush2.msra.mxu0 0.0
    %1923 = vmatprep.subr.mxu0 0.0
    %1924 = vmatpush2.msra.mxu0 0.0
    %1925 = vmatprep.subr.mxu0 0.0
    %1926 = vmatpush2.msra.mxu0 0.0
    %1927 = vmatprep.subr.mxu0 0.0
    %1928 = vmatpush2.msra.mxu0 0.0
    %1929 = vmatprep.subr.mxu0 0.0
    %1930 = vmatpush2.msra.mxu0 0.0
    %1931 = vmatprep.mubr.f32.mxu0 0.0
    %v1932 = vand.u32 %v1784, 4294901760
    %1933 = vmatmul.mubr.f32.gmra.mxu0 %v1932
    %v1934 = vpop.f32.mrf.mxu0
    %v1935 = vadd.f32 %v1859, %v1934
    %v1936 = vpop.f32.mrf.mxu0
    %1937 = vdwg.mxu0
    %1938 = vmatprep.subr.mxu0 0.0
    %1939 = vmatpush1.msra.mxu0 0.0
    %1940 = vmatprep.subr.mxu0 0.0
    %1941 = vmatpush1.msra.mxu0 0.0
    %1942 = vmatprep.subr.mxu0 0.0
    %1943 = vmatpush1.msra.mxu0 0.0
    %1944 = vmatprep.subr.mxu0 0.0
    %1945 = vmatpush1.msra.mxu0 0.0
    %1946 = vmatprep.subr.mxu0 0.0
    %1947 = vmatpush1.msra.mxu0 0.0
    %1948 = vmatprep.subr.mxu0 0.0
    %1949 = vmatpush1.msra.mxu0 0.0
    %1950 = vmatprep.subr.mxu0 0.0
    %1951 = vmatpush1.msra.mxu0 0.0
    %1952 = vmatprep.subr.mxu0 0.0
    %1953 = vmatpush1.msra.mxu0 0.0
    %1954 = vmatprep.subr.mxu0 0.0
    %1955 = vmatpush1.msra.mxu0 0.0
    %1956 = vmatprep.subr.mxu0 0.0
    %1957 = vmatpush1.msra.mxu0 0.0
    %1958 = vmatprep.subr.mxu0 0.0
    %1959 = vmatpush1.msra.mxu0 0.0
    %1960 = vmatprep.subr.mxu0 0.0
    %1961 = vmatpush1.msra.mxu0 0.0
    %1962 = vmatprep.subr.mxu0 0.0
    %1963 = vmatpush1.msra.mxu0 0.0
    %1964 = vmatprep.subr.mxu0 0.0
    %1965 = vmatpush1.msra.mxu0 0.0
    %1966 = vmatprep.subr.mxu0 0.0
    %1967 = vmatpush1.msra.mxu0 0.0
    %1968 = vmatprep.subr.mxu0 0.0
    %v1969 = vand.u32 %v1335, 4294901760
    %v1970 = vsub.f32 %v1335, %v1969
    %1971 = vmatpush1.msra.mxu0 %v1970
    %1972 = vmatprep.subr.mxu0 0.0
    %1973 = vmatpush2.msra.mxu0 0.0
    %1974 = vmatprep.subr.mxu0 0.0
    %1975 = vmatpush2.msra.mxu0 0.0
    %1976 = vmatprep.subr.mxu0 0.0
    %1977 = vmatpush2.msra.mxu0 0.0
    %1978 = vmatprep.subr.mxu0 0.0
    %1979 = vmatpush2.msra.mxu0 0.0
    %1980 = vmatprep.subr.mxu0 0.0
    %1981 = vmatpush2.msra.mxu0 0.0
    %1982 = vmatprep.subr.mxu0 0.0
    %1983 = vmatpush2.msra.mxu0 0.0
    %1984 = vmatprep.subr.mxu0 0.0
    %1985 = vmatpush2.msra.mxu0 0.0
    %1986 = vmatprep.subr.mxu0 0.0
    %1987 = vmatpush2.msra.mxu0 0.0
    %1988 = vmatprep.subr.mxu0 0.0
    %1989 = vmatpush2.msra.mxu0 0.0
    %1990 = vmatprep.subr.mxu0 0.0
    %1991 = vmatpush2.msra.mxu0 0.0
    %1992 = vmatprep.subr.mxu0 0.0
    %1993 = vmatpush2.msra.mxu0 0.0
    %1994 = vmatprep.subr.mxu0 0.0
    %1995 = vmatpush2.msra.mxu0 0.0
    %1996 = vmatprep.subr.mxu0 0.0
    %1997 = vmatpush2.msra.mxu0 0.0
    %1998 = vmatprep.subr.mxu0 0.0
    %1999 = vmatpush2.msra.mxu0 0.0
    %2000 = vmatprep.subr.mxu0 0.0
    %2001 = vmatpush2.msra.mxu0 0.0
    %2002 = vmatprep.subr.mxu0 0.0
    %2003 = vmatpush2.msra.mxu0 0.0
    %2004 = vmatprep.mubr.f32.mxu0 0.0
    %v2005 = vand.u32 %v1784, 4294901760
    %v2006 = vsub.f32 %v1784, %v2005
    %2007 = vmatmul.mubr.f32.gmra.mxu0 %v2006
    %v2008 = vpop.f32.mrf.mxu0
    %v2009 = vadd.f32 %v1935, %v2008
    %v2010 = vpop.f32.mrf.mxu0
    %2011 = vdwg.mxu0
    %2012 = vmatprep.subr.mxu0 0.0
    %2013 = vmatpush1.msra.mxu0 0.0
    %2014 = vmatprep.subr.mxu0 0.0
    %2015 = vmatpush1.msra.mxu0 0.0
    %2016 = vmatprep.subr.mxu0 0.0
    %2017 = vmatpush1.msra.mxu0 0.0
    %2018 = vmatprep.subr.mxu0 0.0
    %2019 = vmatpush1.msra.mxu0 0.0
    %2020 = vmatprep.subr.mxu0 0.0
    %2021 = vmatpush1.msra.mxu0 0.0
    %2022 = vmatprep.subr.mxu0 0.0
    %2023 = vmatpush1.msra.mxu0 0.0
    %2024 = vmatprep.subr.mxu0 0.0
    %2025 = vmatpush1.msra.mxu0 0.0
    %2026 = vmatprep.subr.mxu0 0.0
    %2027 = vmatpush1.msra.mxu0 0.0
    %2028 = vmatprep.subr.mxu0 0.0
    %2029 = vmatpush1.msra.mxu0 0.0
    %2030 = vmatprep.subr.mxu0 0.0
    %2031 = vmatpush1.msra.mxu0 0.0
    %2032 = vmatprep.subr.mxu0 0.0
    %2033 = vmatpush1.msra.mxu0 0.0
    %2034 = vmatprep.subr.mxu0 0.0
    %2035 = vmatpush1.msra.mxu0 0.0
    %2036 = vmatprep.subr.mxu0 0.0
    %2037 = vmatpush1.msra.mxu0 0.0
    %2038 = vmatprep.subr.mxu0 0.0
    %2039 = vmatpush1.msra.mxu0 0.0
    %2040 = vmatprep.subr.mxu0 0.0
    %2041 = vmatpush1.msra.mxu0 0.0
    %2042 = vmatprep.subr.mxu0 0.0
    %v2043 = vand.u32 %v1335, 4294901760
    %2044 = vmatpush1.msra.mxu0 %v2043
    %2045 = vmatprep.subr.mxu0 0.0
    %2046 = vmatpush2.msra.mxu0 0.0
    %2047 = vmatprep.subr.mxu0 0.0
    %2048 = vmatpush2.msra.mxu0 0.0
    %2049 = vmatprep.subr.mxu0 0.0
    %2050 = vmatpush2.msra.mxu0 0.0
    %2051 = vmatprep.subr.mxu0 0.0
    %2052 = vmatpush2.msra.mxu0 0.0
    %2053 = vmatprep.subr.mxu0 0.0
    %2054 = vmatpush2.msra.mxu0 0.0
    %2055 = vmatprep.subr.mxu0 0.0
    %2056 = vmatpush2.msra.mxu0 0.0
    %2057 = vmatprep.subr.mxu0 0.0
    %2058 = vmatpush2.msra.mxu0 0.0
    %2059 = vmatprep.subr.mxu0 0.0
    %2060 = vmatpush2.msra.mxu0 0.0
    %2061 = vmatprep.subr.mxu0 0.0
    %2062 = vmatpush2.msra.mxu0 0.0
    %2063 = vmatprep.subr.mxu0 0.0
    %2064 = vmatpush2.msra.mxu0 0.0
    %2065 = vmatprep.subr.mxu0 0.0
    %2066 = vmatpush2.msra.mxu0 0.0
    %2067 = vmatprep.subr.mxu0 0.0
    %2068 = vmatpush2.msra.mxu0 0.0
    %2069 = vmatprep.subr.mxu0 0.0
    %2070 = vmatpush2.msra.mxu0 0.0
    %2071 = vmatprep.subr.mxu0 0.0
    %2072 = vmatpush2.msra.mxu0 0.0
    %2073 = vmatprep.subr.mxu0 0.0
    %2074 = vmatpush2.msra.mxu0 0.0
    %2075 = vmatprep.subr.mxu0 0.0
    %2076 = vmatpush2.msra.mxu0 0.0
    %2077 = vmatprep.mubr.f32.mxu0 0.0
    %v2078 = vand.u32 %v1784, 4294901760
    %v2079 = vsub.f32 %v1784, %v2078
    %v2080 = vand.u32 %v2079, 4294901760
    %2081 = vmatmul.mubr.f32.gmra.mxu0 %v2080
    %v2082 = vpop.f32.mrf.mxu0
    %v2083 = vadd.f32 %v2009, %v2082
    %v2084 = vpop.f32.mrf.mxu0
    %2085 = vdwg.mxu0
    %2086 = vmatprep.subr.mxu0 0.0
    %2087 = vmatpush1.msra.mxu0 0.0
    %2088 = vmatprep.subr.mxu0 0.0
    %2089 = vmatpush1.msra.mxu0 0.0
    %2090 = vmatprep.subr.mxu0 0.0
    %2091 = vmatpush1.msra.mxu0 0.0
    %2092 = vmatprep.subr.mxu0 0.0
    %2093 = vmatpush1.msra.mxu0 0.0
    %2094 = vmatprep.subr.mxu0 0.0
    %2095 = vmatpush1.msra.mxu0 0.0
    %2096 = vmatprep.subr.mxu0 0.0
    %2097 = vmatpush1.msra.mxu0 0.0
    %2098 = vmatprep.subr.mxu0 0.0
    %2099 = vmatpush1.msra.mxu0 0.0
    %2100 = vmatprep.subr.mxu0 0.0
    %2101 = vmatpush1.msra.mxu0 0.0
    %2102 = vmatprep.subr.mxu0 0.0
    %2103 = vmatpush1.msra.mxu0 0.0
    %2104 = vmatprep.subr.mxu0 0.0
    %2105 = vmatpush1.msra.mxu0 0.0
    %2106 = vmatprep.subr.mxu0 0.0
    %2107 = vmatpush1.msra.mxu0 0.0
    %2108 = vmatprep.subr.mxu0 0.0
    %2109 = vmatpush1.msra.mxu0 0.0
    %2110 = vmatprep.subr.mxu0 0.0
    %2111 = vmatpush1.msra.mxu0 0.0
    %2112 = vmatprep.subr.mxu0 0.0
    %2113 = vmatpush1.msra.mxu0 0.0
    %2114 = vmatprep.subr.mxu0 0.0
    %2115 = vmatpush1.msra.mxu0 0.0
    %2116 = vmatprep.subr.mxu0 0.0
    %v2117 = vand.u32 %v1335, 4294901760
    %v2118 = vsub.f32 %v1335, %v2117
    %v2119 = vand.u32 %v2118, 4294901760
    %2120 = vmatpush1.msra.mxu0 %v2119
    %2121 = vmatprep.subr.mxu0 0.0
    %2122 = vmatpush2.msra.mxu0 0.0
    %2123 = vmatprep.subr.mxu0 0.0
    %2124 = vmatpush2.msra.mxu0 0.0
    %2125 = vmatprep.subr.mxu0 0.0
    %2126 = vmatpush2.msra.mxu0 0.0
    %2127 = vmatprep.subr.mxu0 0.0
    %2128 = vmatpush2.msra.mxu0 0.0
    %2129 = vmatprep.subr.mxu0 0.0
    %2130 = vmatpush2.msra.mxu0 0.0
    %2131 = vmatprep.subr.mxu0 0.0
    %2132 = vmatpush2.msra.mxu0 0.0
    %2133 = vmatprep.subr.mxu0 0.0
    %2134 = vmatpush2.msra.mxu0 0.0
    %2135 = vmatprep.subr.mxu0 0.0
    %2136 = vmatpush2.msra.mxu0 0.0
    %2137 = vmatprep.subr.mxu0 0.0
    %2138 = vmatpush2.msra.mxu0 0.0
    %2139 = vmatprep.subr.mxu0 0.0
    %2140 = vmatpush2.msra.mxu0 0.0
    %2141 = vmatprep.subr.mxu0 0.0
    %2142 = vmatpush2.msra.mxu0 0.0
    %2143 = vmatprep.subr.mxu0 0.0
    %2144 = vmatpush2.msra.mxu0 0.0
    %2145 = vmatprep.subr.mxu0 0.0
    %2146 = vmatpush2.msra.mxu0 0.0
    %2147 = vmatprep.subr.mxu0 0.0
    %2148 = vmatpush2.msra.mxu0 0.0
    %2149 = vmatprep.subr.mxu0 0.0
    %2150 = vmatpush2.msra.mxu0 0.0
    %2151 = vmatprep.subr.mxu0 0.0
    %2152 = vmatpush2.msra.mxu0 0.0
    %2153 = vmatprep.mubr.f32.mxu0 0.0
    %v2154 = vand.u32 %v1784, 4294901760
    %2155 = vmatmul.mubr.f32.gmra.mxu0 %v2154
    %v2156 = vpop.f32.mrf.mxu0
    %v2157 = vadd.f32 %v2083, %v2156
    %v2158 = vpop.f32.mrf.mxu0
    %2159 = vdwg.mxu0
    %2160 = vmatprep.subr.mxu0 0.0
    %2161 = vmatpush1.msra.mxu0 0.0
    %2162 = vmatprep.subr.mxu0 0.0
    %2163 = vmatpush1.msra.mxu0 0.0
    %2164 = vmatprep.subr.mxu0 0.0
    %2165 = vmatpush1.msra.mxu0 0.0
    %2166 = vmatprep.subr.mxu0 0.0
    %2167 = vmatpush1.msra.mxu0 0.0
    %2168 = vmatprep.subr.mxu0 0.0
    %2169 = vmatpush1.msra.mxu0 0.0
    %2170 = vmatprep.subr.mxu0 0.0
    %2171 = vmatpush1.msra.mxu0 0.0
    %2172 = vmatprep.subr.mxu0 0.0
    %2173 = vmatpush1.msra.mxu0 0.0
    %2174 = vmatprep.subr.mxu0 0.0
    %2175 = vmatpush1.msra.mxu0 0.0
    %2176 = vmatprep.subr.mxu0 0.0
    %2177 = vmatpush1.msra.mxu0 0.0
    %2178 = vmatprep.subr.mxu0 0.0
    %2179 = vmatpush1.msra.mxu0 0.0
    %2180 = vmatprep.subr.mxu0 0.0
    %2181 = vmatpush1.msra.mxu0 0.0
    %2182 = vmatprep.subr.mxu0 0.0
    %2183 = vmatpush1.msra.mxu0 0.0
    %2184 = vmatprep.subr.mxu0 0.0
    %2185 = vmatpush1.msra.mxu0 0.0
    %2186 = vmatprep.subr.mxu0 0.0
    %2187 = vmatpush1.msra.mxu0 0.0
    %2188 = vmatprep.subr.mxu0 0.0
    %2189 = vmatpush1.msra.mxu0 0.0
    %2190 = vmatprep.subr.mxu0 0.0
    %v2191 = vand.u32 %v1335, 4294901760
    %2192 = vmatpush1.msra.mxu0 %v2191
    %2193 = vmatprep.subr.mxu0 0.0
    %2194 = vmatpush2.msra.mxu0 0.0
    %2195 = vmatprep.subr.mxu0 0.0
    %2196 = vmatpush2.msra.mxu0 0.0
    %2197 = vmatprep.subr.mxu0 0.0
    %2198 = vmatpush2.msra.mxu0 0.0
    %2199 = vmatprep.subr.mxu0 0.0
    %2200 = vmatpush2.msra.mxu0 0.0
    %2201 = vmatprep.subr.mxu0 0.0
    %2202 = vmatpush2.msra.mxu0 0.0
    %2203 = vmatprep.subr.mxu0 0.0
    %2204 = vmatpush2.msra.mxu0 0.0
    %2205 = vmatprep.subr.mxu0 0.0
    %2206 = vmatpush2.msra.mxu0 0.0
    %2207 = vmatprep.subr.mxu0 0.0
    %2208 = vmatpush2.msra.mxu0 0.0
    %2209 = vmatprep.subr.mxu0 0.0
    %2210 = vmatpush2.msra.mxu0 0.0
    %2211 = vmatprep.subr.mxu0 0.0
    %2212 = vmatpush2.msra.mxu0 0.0
    %2213 = vmatprep.subr.mxu0 0.0
    %2214 = vmatpush2.msra.mxu0 0.0
    %2215 = vmatprep.subr.mxu0 0.0
    %2216 = vmatpush2.msra.mxu0 0.0
    %2217 = vmatprep.subr.mxu0 0.0
    %2218 = vmatpush2.msra.mxu0 0.0
    %2219 = vmatprep.subr.mxu0 0.0
    %2220 = vmatpush2.msra.mxu0 0.0
    %2221 = vmatprep.subr.mxu0 0.0
    %2222 = vmatpush2.msra.mxu0 0.0
    %2223 = vmatprep.subr.mxu0 0.0
    %2224 = vmatpush2.msra.mxu0 0.0
    %2225 = vmatprep.mubr.f32.mxu0 0.0
    %v2226 = vand.u32 %v1784, 4294901760
    %2227 = vmatmul.mubr.f32.gmra.mxu0 %v2226
    %v2228 = vpop.f32.mrf.mxu0
    %v2229 = vadd.f32 %v2157, %v2228
    %v2230 = vpop.f32.mrf.mxu0
    %2231 = vdwg.mxu0
    %v2232 = vld [vmem:[%s3] sm:$0x1]
    %v2234 = vlaneseq
    %v2235 = vshrl.u32 %v2234, 7
    %v2236 = vsub.s32 0, %v2235
    %v2237 = vrot.slane %v2232, %v2236
    %v2239 = vmul.f32 %v2229, %v2237
    %v2240 = vsub.f32 %v21, %v1780
    %v2241 = vmul.f32 %v2240, %v2239
    %v2242 = vld [vmem:[%s4] sm:$0x1]
    %v2244 = vlaneseq
    %v2245 = vshrl.u32 %v2244, 7
    %v2246 = vsub.s32 0, %v2245
    %v2247 = vrot.slane %v2242, %v2246
    %v2249 = vadd.f32 %v2241, %v2247
    %v2250 = vmul.f32 %v2249, %v2249
    %v2251 = vmul.f32 %v2249, %v2250
    %v2252 = vmul.f32 %v2251, 0.044715
    %v2253 = vadd.f32 %v2249, %v2252
    %v2254 = vmul.f32 %v2253, 0.7978846
    %v2255 = vtanh.pop %v2254
    %v2256 = vadd.f32 %v2255, 1.0
    %v2257 = vmul.f32 %v2256, 0.5
    %v2258 = vmul.f32 %v2249, %v2257
    %2259 = vst [vmem:[#allocation2] sm:$0xf] %v2258
    // Predicated region
    $region22: #{tpu_custom_call.1} parent=1 // pred_check
      _
    $region23: #{tpu_custom_call.1} parent=1 // pred_check_branch
      %2261 = sbr.rel (0) target = $region25
    $region24: #{tpu_custom_call.1} parent=1 // pred_region
      %s2263 = ssub.s32 64, 64
      %2264 = vsyncadd [#allocation3], %s2263
      %s2266 = sshll.u32 [#allocation2], 4
      %s2267 = int_to_ptr.vmem [resolvable:$true] %s2266
      %2269 = dma.vmem_to_hbm [thread:$0]  %s2267, 64, %s5, [#allocation3]
    $region25: #{tpu_custom_call.1} parent=1 // pred_fallthru
      _
    // Predicated region
    $region26: #{tpu_custom_call.1} parent=1 // pred_check
      _
    $region27: #{tpu_custom_call.1} parent=1 // pred_check_branch
      %2271 = sbr.rel (0) target = $region29
    $region28: #{tpu_custom_call.1} parent=1 // pred_region
      %2272 = dma.done [#allocation3], 64
    $region29: #{tpu_custom_call.1} parent=1 // pred_fallthru
      _
    %2273 = vsyncpa [#allocation3], 1

</llo_original>
